<compile_context>
chip_gen: v7x
topology: tpu7x:2x2x1
jax: 0.10.0
libtpu: 0.0.40
codegen_flags: <defaults>
</compile_context>

<pallas_src>
import functools

import jax
import jax.numpy as jnp
from jax import lax
from jax.experimental import pallas as pl
from jax.experimental.pallas import tpu as pltpu

NEG_SLOPE = 0.01  # nn.LeakyReLU default negative_slope


def _vmem_spec():
    return pl.BlockSpec(memory_space=pltpu.MemorySpace.VMEM)


# --------------------------------------------------------------------------
# Fused forward kernel.
# refs layout: x, w_emb, b_emb, [wih_l, whh_l, b_l] * num_layers,
#              w_out, b_out, out_ref, y_scratch
#   x      : (T, 159)
#   w_emb  : (159, E),  b_emb : (1, E)
#   wih_0  : (E, 8H)          (shared emb input, lane-concat of both stacks)
#   wih_l>0: (2H, 8H)         (block-diagonal: [y_xyz | y_vel] input)
#   whh_l  : (2H, 8H)         (block-diagonal)
#   b_l    : (1, 8H)          (b_ih + b_hh, both stacks)
#   w_out  : (2H, 72)         (block-diagonal xyz/vel output projections)
#   b_out  : (1, 72)
#   out    : (T, 72)          ([xyz(36) | vel(36)])
#   y_sc   : (T, 2H) VMEM scratch holding the current layer's hidden sequence
# Combined gate lane order (each block H lanes): i_x,i_v,f_x,f_v,o_x,o_v,g_x,g_v
# --------------------------------------------------------------------------
def _fused_kernel(*refs, num_layers, hidden):
    H = hidden
    x_ref, w_emb_ref, b_emb_ref = refs[0], refs[1], refs[2]
    layer_refs = refs[3:3 + 3 * num_layers]
    w_out_ref = refs[3 + 3 * num_layers]
    b_out_ref = refs[4 + 3 * num_layers]
    out_ref = refs[5 + 3 * num_layers]
    y_sc = refs[6 + 3 * num_layers]

    T = x_ref.shape[0]

    # ---- human_input_embedding: (T,159)@(159,E) + b ----
    layer_in = (jnp.dot(x_ref[...], w_emb_ref[...],
                        preferred_element_type=jnp.float32)
                + b_emb_ref[...])

    # ---- stacked LSTM layers, lstm_xyz & lstm_vel lane-packed together ----
    for l in range(num_layers):
        wih = layer_refs[3 * l][...]
        whh = layer_refs[3 * l + 1][...]
        b = layer_refs[3 * l + 2][...]

        # Hoisted input projection (+ bias) for all timesteps: (T, 8H).
        x_proj = jnp.dot(layer_in, wih, preferred_element_type=jnp.float32) + b

        h = jnp.ones((1, 2 * H), jnp.float32)   # [h_xyz | h_vel], h0 = ones
        c = jnp.ones((1, 2 * H), jnp.float32)   # c0 = ones
        for t in range(T):                       # T is static -> fully unrolled
            gates = x_proj[t:t + 1, :] + jnp.dot(
                h, whh, preferred_element_type=jnp.float32)          # (1, 8H)
            sig = jax.nn.sigmoid(gates[:, :6 * H])   # i, f, o slab (both stacks)
            g = jnp.tanh(gates[:, 6 * H:])           # g slab (both stacks)
            i_g = sig[:, :2 * H]
            f_g = sig[:, 2 * H:4 * H]
            o_g = sig[:, 4 * H:6 * H]
            c = f_g * c + i_g * g
            h = o_g * jnp.tanh(c)
            y_sc[t:t + 1, :] = h
        layer_in = y_sc[...]                     # (T, 2H) -> next layer / output

    # ---- merged output Linears: (T,2H)@(2H,72) + b ----
    out = (jnp.dot(layer_in, w_out_ref[...],
                   preferred_element_type=jnp.float32) + b_out_ref[...])
    out = jnp.where(out >= 0, out, NEG_SLOPE * out)        # LeakyReLU, both halves
    out_t = jnp.tanh(out)
    lane = lax.broadcasted_iota(jnp.int32, out.shape, 1)
    half = out.shape[1] // 2
    out_ref[...] = jnp.where(lane >= half, out_t, out).astype(out_ref.dtype)


# --------------------------------------------------------------------------
# Parameter init (deterministic, PyTorch-like uniform fan-in scaling),
# kept in per-stack / per-gate layout so the pure-JAX reference is unchanged.
# --------------------------------------------------------------------------
def init_params(key, embedding_dim, hidden_dim, num_layers):
    keys = list(jax.random.split(key, 64))
    kit = iter(keys)

    def lin(in_d, out_d):
        s = 1.0 / (in_d ** 0.5)
        w = jax.random.uniform(next(kit), (in_d, out_d), jnp.float32, -s, s)
        b = jax.random.uniform(next(kit), (1, out_d), jnp.float32, -s, s)
        return w, b

    def lstm_stack(in_dim, hid, n_layers):
        layers = []
        for l in range(n_layers):
            d_in = in_dim if l == 0 else hid
            s = 1.0 / (hid ** 0.5)
            wih = jax.random.uniform(next(kit), (4, d_in, hid), jnp.float32, -s, s)
            whh = jax.random.uniform(next(kit), (4, hid, hid), jnp.float32, -s, s)
            b = jax.random.uniform(next(kit), (4, 1, hid), jnp.float32, -s, s)
            layers.append((wih, whh, b))   # b = b_ih + b_hh (pre-summed)
        return layers

    params = {"hidden_dim": hidden_dim}
    params["w_emb"], params["b_emb"] = lin(159, embedding_dim)
    params["lstm_xyz"] = lstm_stack(embedding_dim, hidden_dim, num_layers)
    params["lstm_vel"] = lstm_stack(embedding_dim, hidden_dim, num_layers)
    params["w_out_xyz"], params["b_out_xyz"] = lin(hidden_dim, 36)
    params["w_out_vel"], params["b_out_vel"] = lin(hidden_dim, 36)
    return params


# --------------------------------------------------------------------------
# Repack PyTorch-layout params into the fused lane-packed layout.
# --------------------------------------------------------------------------
def prepare_fused_params(params):
    layers_x = params["lstm_xyz"]
    layers_v = params["lstm_vel"]
    num_layers = len(layers_x)

    # PyTorch gate order is (i, f, g, o); put the sigmoid gates first so one
    # EUP call covers i/f/o: lane order [i_x,i_v,f_x,f_v,o_x,o_v,g_x,g_v].
    gate_order = (0, 1, 3, 2)

    def shared_input_cols(wx, wv):
        # layer 0: both stacks consume the same embedding -> plain lane concat
        blocks = []
        for k in gate_order:
            blocks += [wx[k], wv[k]]
        return jnp.concatenate(blocks, axis=1)

    def blockdiag_cols(wx, wv):
        # input is [feat_x | feat_v]: block-diagonal so each stack only reads
        # its own half of the input lanes
        blocks = []
        for k in gate_order:
            blocks.append(jnp.concatenate([wx[k], jnp.zeros_like(wv[k])], axis=0))
            blocks.append(jnp.concatenate([jnp.zeros_like(wx[k]), wv[k]], axis=0))
        return jnp.concatenate(blocks, axis=1)

    def comb_bias(bx, bv):
        blocks = []
        for k in gate_order:
            blocks += [bx[k], bv[k]]
        return jnp.concatenate(blocks, axis=1)

    fused_layers = []
    for l in range(num_layers):
        wih_x, whh_x, b_x = layers_x[l]
        wih_v, whh_v, b_v = layers_v[l]
        wih_c = (shared_input_cols(wih_x, wih_v) if l == 0
                 else blockdiag_cols(wih_x, wih_v))
        whh_c = blockdiag_cols(whh_x, whh_v)
        b_c = comb_bias(b_x, b_v)
        fused_layers.append((wih_c, whh_c, b_c))

    # Merged output projection (2H, 72), block-diagonal.
    out_x = params["w_out_xyz"]
    out_v = params["w_out_vel"]
    w_out_c = jnp.concatenate(
        [jnp.concatenate([out_x, jnp.zeros_like(out_v)], axis=1),
         jnp.concatenate([jnp.zeros_like(out_x), out_v], axis=1)], axis=0)
    b_out_c = jnp.concatenate([params["b_out_xyz"], params["b_out_vel"]], axis=1)
    return fused_layers, w_out_c, b_out_c


# --------------------------------------------------------------------------
# Forward pass: single fused pallas_call.
# --------------------------------------------------------------------------
def lstm_presep_forward(human_inputs, params):
    T = human_inputs.shape[0]
    H = params["hidden_dim"]
    num_layers = len(params["lstm_xyz"])
    x = human_inputs.reshape(T, human_inputs.shape[-1])       # batch=1 squeezed

    fused_layers, w_out_c, b_out_c = prepare_fused_params(params)
    flat_layer_args = [t for triple in fused_layers for t in triple]
    n_in = 5 + 3 * num_layers

    out = pl.pallas_call(
        functools.partial(_fused_kernel, num_layers=num_layers, hidden=H),
        out_shape=jax.ShapeDtypeStruct((T, 72), jnp.float32),
        in_specs=[_vmem_spec()] * n_in,
        out_specs=_vmem_spec(),
        scratch_shapes=[pltpu.VMEM((T, 2 * H), jnp.float32)],
    )(x, params["w_emb"], params["b_emb"], *flat_layer_args, w_out_c, b_out_c)

    out_xyz = out[:, :36].reshape(T, 1, 36)
    out_vel = out[:, 36:].reshape(T, 1, 36)
    return out_xyz, out_vel


# --------------------------------------------------------------------------
# Pure-JAX reference (operates on the original per-stack/per-gate params)
# --------------------------------------------------------------------------
def ref_forward(human_inputs, params):
    T = human_inputs.shape[0]
    hid = params["hidden_dim"]
    x = human_inputs.reshape(T, -1)
    emb = x @ params["w_emb"] + params["b_emb"]

    def lstm_ref(layers):
        h_in = emb
        for (wih, whh, b) in layers:
            h = jnp.ones((1, hid), jnp.float32)
            c = jnp.ones((1, hid), jnp.float32)
            outs = []
            for t in range(T):
                xt = h_in[t:t + 1]
                g = [xt @ wih[k] + h @ whh[k] + b[k] for k in range(4)]
                i = jax.nn.sigmoid(g[0])
                f = jax.nn.sigmoid(g[1])
                gg = jnp.tanh(g[2])
                o = jax.nn.sigmoid(g[3])
                c = f * c + i * gg
                h = o * jnp.tanh(c)
                outs.append(h)
            h_in = jnp.concatenate(outs, axis=0)
        return h_in

    def leaky(v):
        return jnp.where(v >= 0, v, NEG_SLOPE * v)

    xyz = leaky(lstm_ref(params["lstm_xyz"]) @ params["w_out_xyz"]
                + params["b_out_xyz"])
    vel = jnp.tanh(leaky(lstm_ref(params["lstm_vel"]) @ params["w_out_vel"]
                         + params["b_out_vel"]))
    return xyz.reshape(T, 1, 36), vel.reshape(T, 1, 36)


if __name__ == "__main__":
    embedding_dim = 32
    hidden_dim = 32
    lstm_num_layers = 2
    seq_len = 8

    key = jax.random.PRNGKey(0)
    k_in, k_par = jax.random.split(key)
    human_inputs = jax.random.normal(k_in, (seq_len, 1, 159), jnp.float32)
    params = init_params(k_par, embedding_dim, hidden_dim, lstm_num_layers)

    out_xyz, out_vel = lstm_presep_forward(human_inputs, params)
    jax.block_until_ready(out_xyz)
    jax.block_until_ready(out_vel)

    # sanity check against a pure-JAX reference
    ref_xyz, ref_vel = ref_forward(human_inputs, params)
    max_diff = max(float(jnp.max(jnp.abs(out_xyz - ref_xyz))),
                   float(jnp.max(jnp.abs(out_vel - ref_vel))))
    print(f"max_abs_diff_vs_ref={max_diff:.3e}")
    print("out_xyz shape:", out_xyz.shape, "out_vel shape:", out_vel.shape)
    assert max_diff < 1e-2, "fused Pallas kernel diverges from reference"

    print("KERNEL_OK")
</pallas_src>

<mosaic_0001>
module attributes {stable_mosaic.version = 11 : i64} {
  func.func @_fused_kernel(%arg0: memref<8x159xf32, #tpu.memory_space<vmem>>, %arg1: memref<159x32xf32, #tpu.memory_space<vmem>>, %arg2: memref<1x32xf32, #tpu.memory_space<vmem>>, %arg3: memref<32x256xf32, #tpu.memory_space<vmem>>, %arg4: memref<64x256xf32, #tpu.memory_space<vmem>>, %arg5: memref<1x256xf32, #tpu.memory_space<vmem>>, %arg6: memref<64x256xf32, #tpu.memory_space<vmem>>, %arg7: memref<64x256xf32, #tpu.memory_space<vmem>>, %arg8: memref<1x256xf32, #tpu.memory_space<vmem>>, %arg9: memref<64x72xf32, #tpu.memory_space<vmem>>, %arg10: memref<1x72xf32, #tpu.memory_space<vmem>>, %arg11: memref<8x72xf32, #tpu.memory_space<vmem>>, %arg12: memref<8x64xf32, #tpu.memory_space<vmem>>) attributes {dimension_semantics = [], scalar_prefetch = 0 : i64, scratch_operands = 1 : i64, tpu.core_type = #tpu.core_type<tc>} {
    %c0 = arith.constant 0 : index
    %c0_0 = arith.constant 0 : index
    %0 = vector.load %arg0[%c0, %c0_0] : memref<8x159xf32, #tpu.memory_space<vmem>>, vector<8x159xf32>
    %c0_1 = arith.constant 0 : index
    %c0_2 = arith.constant 0 : index
    %1 = vector.load %arg1[%c0_1, %c0_2] : memref<159x32xf32, #tpu.memory_space<vmem>>, vector<159x32xf32>
    %cst = arith.constant dense<0.000000e+00> : vector<8x32xf32>
    %2 = tpu.matmul %0, %1, %cst {dimension_numbers = #tpu.dot_dimension_numbers<[1], [0], [0], [1], [0, 0, 1, 1], [], []>} : vector<8x159xf32>, vector<159x32xf32>, vector<8x32xf32> -> vector<8x32xf32>
    %c0_3 = arith.constant 0 : index
    %c0_4 = arith.constant 0 : index
    %3 = vector.load %arg2[%c0_3, %c0_4] : memref<1x32xf32, #tpu.memory_space<vmem>>, vector<1x32xf32>
    %4 = vector.broadcast %3 : vector<1x32xf32> to vector<8x32xf32>
    %5 = arith.addf %2, %4 : vector<8x32xf32>
    %c0_5 = arith.constant 0 : index
    %c0_6 = arith.constant 0 : index
    %6 = vector.load %arg3[%c0_5, %c0_6] : memref<32x256xf32, #tpu.memory_space<vmem>>, vector<32x256xf32>
    %c0_7 = arith.constant 0 : index
    %c0_8 = arith.constant 0 : index
    %7 = vector.load %arg4[%c0_7, %c0_8] : memref<64x256xf32, #tpu.memory_space<vmem>>, vector<64x256xf32>
    %c0_9 = arith.constant 0 : index
    %c0_10 = arith.constant 0 : index
    %8 = vector.load %arg5[%c0_9, %c0_10] : memref<1x256xf32, #tpu.memory_space<vmem>>, vector<1x256xf32>
    %cst_11 = arith.constant dense<0.000000e+00> : vector<8x256xf32>
    %9 = tpu.matmul %5, %6, %cst_11 {dimension_numbers = #tpu.dot_dimension_numbers<[1], [0], [0], [1], [0, 0, 1, 1], [], []>} : vector<8x32xf32>, vector<32x256xf32>, vector<8x256xf32> -> vector<8x256xf32>
    %10 = vector.broadcast %8 : vector<1x256xf32> to vector<8x256xf32>
    %11 = arith.addf %9, %10 : vector<8x256xf32>
    %cst_12 = arith.constant 1.000000e+00 : f32
    %12 = vector.broadcast %cst_12 : f32 to vector<1x64xf32>
    %cst_13 = arith.constant 1.000000e+00 : f32
    %13 = vector.broadcast %cst_13 : f32 to vector<1x64xf32>
    %14 = vector.extract_strided_slice %11 {offsets = [0, 0], sizes = [1, 256], strides = [1, 1]} : vector<8x256xf32> to vector<1x256xf32>
    %cst_14 = arith.constant dense<0.000000e+00> : vector<1x256xf32>
    %15 = tpu.matmul %12, %7, %cst_14 {dimension_numbers = #tpu.dot_dimension_numbers<[1], [0], [0], [1], [0, 0, 1, 1], [], []>} : vector<1x64xf32>, vector<64x256xf32>, vector<1x256xf32> -> vector<1x256xf32>
    %16 = arith.addf %14, %15 : vector<1x256xf32>
    %17 = vector.extract_strided_slice %16 {offsets = [0, 0], sizes = [1, 192], strides = [1, 1]} : vector<1x256xf32> to vector<1x192xf32>
    %18 = arith.negf %17 : vector<1x192xf32>
    %19 = math.exp %18 : vector<1x192xf32>
    %cst_15 = arith.constant 1.000000e+00 : f32
    %20 = vector.broadcast %cst_15 : f32 to vector<1x192xf32>
    %21 = arith.addf %20, %19 : vector<1x192xf32>
    %22 = arith.divf %20, %21 : vector<1x192xf32>
    %23 = vector.extract_strided_slice %16 {offsets = [0, 192], sizes = [1, 64], strides = [1, 1]} : vector<1x256xf32> to vector<1x64xf32>
    %24 = math.tanh %23 : vector<1x64xf32>
    %25 = vector.extract_strided_slice %22 {offsets = [0, 0], sizes = [1, 64], strides = [1, 1]} : vector<1x192xf32> to vector<1x64xf32>
    %26 = vector.extract_strided_slice %22 {offsets = [0, 64], sizes = [1, 64], strides = [1, 1]} : vector<1x192xf32> to vector<1x64xf32>
    %27 = vector.extract_strided_slice %22 {offsets = [0, 128], sizes = [1, 64], strides = [1, 1]} : vector<1x192xf32> to vector<1x64xf32>
    %28 = arith.mulf %26, %13 : vector<1x64xf32>
    %29 = arith.mulf %25, %24 : vector<1x64xf32>
    %30 = arith.addf %28, %29 : vector<1x64xf32>
    %31 = math.tanh %30 : vector<1x64xf32>
    %32 = arith.mulf %27, %31 : vector<1x64xf32>
    %c0_16 = arith.constant 0 : index
    %c0_17 = arith.constant 0 : index
    %33 = vector.load %arg12[%c0_16, %c0_17] : memref<8x64xf32, #tpu.memory_space<vmem>>, vector<1x64xf32>
    tpu.vector_store %arg12[%c0_16, %c0_17], %32 {strides = array<i32>} : memref<8x64xf32, #tpu.memory_space<vmem>>, vector<1x64xf32>,
    %34 = vector.extract_strided_slice %11 {offsets = [1, 0], sizes = [1, 256], strides = [1, 1]} : vector<8x256xf32> to vector<1x256xf32>
    %cst_18 = arith.constant dense<0.000000e+00> : vector<1x256xf32>
    %35 = tpu.matmul %32, %7, %cst_18 {dimension_numbers = #tpu.dot_dimension_numbers<[1], [0], [0], [1], [0, 0, 1, 1], [], []>} : vector<1x64xf32>, vector<64x256xf32>, vector<1x256xf32> -> vector<1x256xf32>
    %36 = arith.addf %34, %35 : vector<1x256xf32>
    %37 = vector.extract_strided_slice %36 {offsets = [0, 0], sizes = [1, 192], strides = [1, 1]} : vector<1x256xf32> to vector<1x192xf32>
    %38 = arith.negf %37 : vector<1x192xf32>
    %39 = math.exp %38 : vector<1x192xf32>
    %cst_19 = arith.constant 1.000000e+00 : f32
    %40 = vector.broadcast %cst_19 : f32 to vector<1x192xf32>
    %41 = arith.addf %40, %39 : vector<1x192xf32>
    %42 = arith.divf %40, %41 : vector<1x192xf32>
    %43 = vector.extract_strided_slice %36 {offsets = [0, 192], sizes = [1, 64], strides = [1, 1]} : vector<1x256xf32> to vector<1x64xf32>
    %44 = math.tanh %43 : vector<1x64xf32>
    %45 = vector.extract_strided_slice %42 {offsets = [0, 0], sizes = [1, 64], strides = [1, 1]} : vector<1x192xf32> to vector<1x64xf32>
    %46 = vector.extract_strided_slice %42 {offsets = [0, 64], sizes = [1, 64], strides = [1, 1]} : vector<1x192xf32> to vector<1x64xf32>
    %47 = vector.extract_strided_slice %42 {offsets = [0, 128], sizes = [1, 64], strides = [1, 1]} : vector<1x192xf32> to vector<1x64xf32>
    %48 = arith.mulf %46, %30 : vector<1x64xf32>
    %49 = arith.mulf %45, %44 : vector<1x64xf32>
    %50 = arith.addf %48, %49 : vector<1x64xf32>
    %51 = math.tanh %50 : vector<1x64xf32>
    %52 = arith.mulf %47, %51 : vector<1x64xf32>
    %c1 = arith.constant 1 : index
    %c0_20 = arith.constant 0 : index
    %53 = vector.load %arg12[%c1, %c0_20] : memref<8x64xf32, #tpu.memory_space<vmem>>, vector<1x64xf32>
    tpu.vector_store %arg12[%c1, %c0_20], %52 {strides = array<i32>} : memref<8x64xf32, #tpu.memory_space<vmem>>, vector<1x64xf32>,
    %54 = vector.extract_strided_slice %11 {offsets = [2, 0], sizes = [1, 256], strides = [1, 1]} : vector<8x256xf32> to vector<1x256xf32>
    %cst_21 = arith.constant dense<0.000000e+00> : vector<1x256xf32>
    %55 = tpu.matmul %52, %7, %cst_21 {dimension_numbers = #tpu.dot_dimension_numbers<[1], [0], [0], [1], [0, 0, 1, 1], [], []>} : vector<1x64xf32>, vector<64x256xf32>, vector<1x256xf32> -> vector<1x256xf32>
    %56 = arith.addf %54, %55 : vector<1x256xf32>
    %57 = vector.extract_strided_slice %56 {offsets = [0, 0], sizes = [1, 192], strides = [1, 1]} : vector<1x256xf32> to vector<1x192xf32>
    %58 = arith.negf %57 : vector<1x192xf32>
    %59 = math.exp %58 : vector<1x192xf32>
    %cst_22 = arith.constant 1.000000e+00 : f32
    %60 = vector.broadcast %cst_22 : f32 to vector<1x192xf32>
    %61 = arith.addf %60, %59 : vector<1x192xf32>
    %62 = arith.divf %60, %61 : vector<1x192xf32>
    %63 = vector.extract_strided_slice %56 {offsets = [0, 192], sizes = [1, 64], strides = [1, 1]} : vector<1x256xf32> to vector<1x64xf32>
    %64 = math.tanh %63 : vector<1x64xf32>
    %65 = vector.extract_strided_slice %62 {offsets = [0, 0], sizes = [1, 64], strides = [1, 1]} : vector<1x192xf32> to vector<1x64xf32>
    %66 = vector.extract_strided_slice %62 {offsets = [0, 64], sizes = [1, 64], strides = [1, 1]} : vector<1x192xf32> to vector<1x64xf32>
    %67 = vector.extract_strided_slice %62 {offsets = [0, 128], sizes = [1, 64], strides = [1, 1]} : vector<1x192xf32> to vector<1x64xf32>
    %68 = arith.mulf %66, %50 : vector<1x64xf32>
    %69 = arith.mulf %65, %64 : vector<1x64xf32>
    %70 = arith.addf %68, %69 : vector<1x64xf32>
    %71 = math.tanh %70 : vector<1x64xf32>
    %72 = arith.mulf %67, %71 : vector<1x64xf32>
    %c2 = arith.constant 2 : index
    %c0_23 = arith.constant 0 : index
    %73 = vector.load %arg12[%c2, %c0_23] : memref<8x64xf32, #tpu.memory_space<vmem>>, vector<1x64xf32>
    tpu.vector_store %arg12[%c2, %c0_23], %72 {strides = array<i32>} : memref<8x64xf32, #tpu.memory_space<vmem>>, vector<1x64xf32>,
    %74 = vector.extract_strided_slice %11 {offsets = [3, 0], sizes = [1, 256], strides = [1, 1]} : vector<8x256xf32> to vector<1x256xf32>
    %cst_24 = arith.constant dense<0.000000e+00> : vector<1x256xf32>
    %75 = tpu.matmul %72, %7, %cst_24 {dimension_numbers = #tpu.dot_dimension_numbers<[1], [0], [0], [1], [0, 0, 1, 1], [], []>} : vector<1x64xf32>, vector<64x256xf32>, vector<1x256xf32> -> vector<1x256xf32>
    %76 = arith.addf %74, %75 : vector<1x256xf32>
    %77 = vector.extract_strided_slice %76 {offsets = [0, 0], sizes = [1, 192], strides = [1, 1]} : vector<1x256xf32> to vector<1x192xf32>
    %78 = arith.negf %77 : vector<1x192xf32>
    %79 = math.exp %78 : vector<1x192xf32>
    %cst_25 = arith.constant 1.000000e+00 : f32
    %80 = vector.broadcast %cst_25 : f32 to vector<1x192xf32>
    %81 = arith.addf %80, %79 : vector<1x192xf32>
    %82 = arith.divf %80, %81 : vector<1x192xf32>
    %83 = vector.extract_strided_slice %76 {offsets = [0, 192], sizes = [1, 64], strides = [1, 1]} : vector<1x256xf32> to vector<1x64xf32>
    %84 = math.tanh %83 : vector<1x64xf32>
    %85 = vector.extract_strided_slice %82 {offsets = [0, 0], sizes = [1, 64], strides = [1, 1]} : vector<1x192xf32> to vector<1x64xf32>
    %86 = vector.extract_strided_slice %82 {offsets = [0, 64], sizes = [1, 64], strides = [1, 1]} : vector<1x192xf32> to vector<1x64xf32>
    %87 = vector.extract_strided_slice %82 {offsets = [0, 128], sizes = [1, 64], strides = [1, 1]} : vector<1x192xf32> to vector<1x64xf32>
    %88 = arith.mulf %86, %70 : vector<1x64xf32>
    %89 = arith.mulf %85, %84 : vector<1x64xf32>
    %90 = arith.addf %88, %89 : vector<1x64xf32>
    %91 = math.tanh %90 : vector<1x64xf32>
    %92 = arith.mulf %87, %91 : vector<1x64xf32>
    %c3 = arith.constant 3 : index
    %c0_26 = arith.constant 0 : index
    %93 = vector.load %arg12[%c3, %c0_26] : memref<8x64xf32, #tpu.memory_space<vmem>>, vector<1x64xf32>
    tpu.vector_store %arg12[%c3, %c0_26], %92 {strides = array<i32>} : memref<8x64xf32, #tpu.memory_space<vmem>>, vector<1x64xf32>,
    %94 = vector.extract_strided_slice %11 {offsets = [4, 0], sizes = [1, 256], strides = [1, 1]} : vector<8x256xf32> to vector<1x256xf32>
    %cst_27 = arith.constant dense<0.000000e+00> : vector<1x256xf32>
    %95 = tpu.matmul %92, %7, %cst_27 {dimension_numbers = #tpu.dot_dimension_numbers<[1], [0], [0], [1], [0, 0, 1, 1], [], []>} : vector<1x64xf32>, vector<64x256xf32>, vector<1x256xf32> -> vector<1x256xf32>
    %96 = arith.addf %94, %95 : vector<1x256xf32>
    %97 = vector.extract_strided_slice %96 {offsets = [0, 0], sizes = [1, 192], strides = [1, 1]} : vector<1x256xf32> to vector<1x192xf32>
    %98 = arith.negf %97 : vector<1x192xf32>
    %99 = math.exp %98 : vector<1x192xf32>
    %cst_28 = arith.constant 1.000000e+00 : f32
    %100 = vector.broadcast %cst_28 : f32 to vector<1x192xf32>
    %101 = arith.addf %100, %99 : vector<1x192xf32>
    %102 = arith.divf %100, %101 : vector<1x192xf32>
    %103 = vector.extract_strided_slice %96 {offsets = [0, 192], sizes = [1, 64], strides = [1, 1]} : vector<1x256xf32> to vector<1x64xf32>
    %104 = math.tanh %103 : vector<1x64xf32>
    %105 = vector.extract_strided_slice %102 {offsets = [0, 0], sizes = [1, 64], strides = [1, 1]} : vector<1x192xf32> to vector<1x64xf32>
    %106 = vector.extract_strided_slice %102 {offsets = [0, 64], sizes = [1, 64], strides = [1, 1]} : vector<1x192xf32> to vector<1x64xf32>
    %107 = vector.extract_strided_slice %102 {offsets = [0, 128], sizes = [1, 64], strides = [1, 1]} : vector<1x192xf32> to vector<1x64xf32>
    %108 = arith.mulf %106, %90 : vector<1x64xf32>
    %109 = arith.mulf %105, %104 : vector<1x64xf32>
    %110 = arith.addf %108, %109 : vector<1x64xf32>
    %111 = math.tanh %110 : vector<1x64xf32>
    %112 = arith.mulf %107, %111 : vector<1x64xf32>
    %c4 = arith.constant 4 : index
    %c0_29 = arith.constant 0 : index
    %113 = vector.load %arg12[%c4, %c0_29] : memref<8x64xf32, #tpu.memory_space<vmem>>, vector<1x64xf32>
    tpu.vector_store %arg12[%c4, %c0_29], %112 {strides = array<i32>} : memref<8x64xf32, #tpu.memory_space<vmem>>, vector<1x64xf32>,
    %114 = vector.extract_strided_slice %11 {offsets = [5, 0], sizes = [1, 256], strides = [1, 1]} : vector<8x256xf32> to vector<1x256xf32>
    %cst_30 = arith.constant dense<0.000000e+00> : vector<1x256xf32>
    %115 = tpu.matmul %112, %7, %cst_30 {dimension_numbers = #tpu.dot_dimension_numbers<[1], [0], [0], [1], [0, 0, 1, 1], [], []>} : vector<1x64xf32>, vector<64x256xf32>, vector<1x256xf32> -> vector<1x256xf32>
    %116 = arith.addf %114, %115 : vector<1x256xf32>
    %117 = vector.extract_strided_slice %116 {offsets = [0, 0], sizes = [1, 192], strides = [1, 1]} : vector<1x256xf32> to vector<1x192xf32>
    %118 = arith.negf %117 : vector<1x192xf32>
    %119 = math.exp %118 : vector<1x192xf32>
    %cst_31 = arith.constant 1.000000e+00 : f32
    %120 = vector.broadcast %cst_31 : f32 to vector<1x192xf32>
    %121 = arith.addf %120, %119 : vector<1x192xf32>
    %122 = arith.divf %120, %121 : vector<1x192xf32>
    %123 = vector.extract_strided_slice %116 {offsets = [0, 192], sizes = [1, 64], strides = [1, 1]} : vector<1x256xf32> to vector<1x64xf32>
    %124 = math.tanh %123 : vector<1x64xf32>
    %125 = vector.extract_strided_slice %122 {offsets = [0, 0], sizes = [1, 64], strides = [1, 1]} : vector<1x192xf32> to vector<1x64xf32>
    %126 = vector.extract_strided_slice %122 {offsets = [0, 64], sizes = [1, 64], strides = [1, 1]} : vector<1x192xf32> to vector<1x64xf32>
    %127 = vector.extract_strided_slice %122 {offsets = [0, 128], sizes = [1, 64], strides = [1, 1]} : vector<1x192xf32> to vector<1x64xf32>
    %128 = arith.mulf %126, %110 : vector<1x64xf32>
    %129 = arith.mulf %125, %124 : vector<1x64xf32>
    %130 = arith.addf %128, %129 : vector<1x64xf32>
    %131 = math.tanh %130 : vector<1x64xf32>
    %132 = arith.mulf %127, %131 : vector<1x64xf32>
    %c5 = arith.constant 5 : index
    %c0_32 = arith.constant 0 : index
    %133 = vector.load %arg12[%c5, %c0_32] : memref<8x64xf32, #tpu.memory_space<vmem>>, vector<1x64xf32>
    tpu.vector_store %arg12[%c5, %c0_32], %132 {strides = array<i32>} : memref<8x64xf32, #tpu.memory_space<vmem>>, vector<1x64xf32>,
    %134 = vector.extract_strided_slice %11 {offsets = [6, 0], sizes = [1, 256], strides = [1, 1]} : vector<8x256xf32> to vector<1x256xf32>
    %cst_33 = arith.constant dense<0.000000e+00> : vector<1x256xf32>
    %135 = tpu.matmul %132, %7, %cst_33 {dimension_numbers = #tpu.dot_dimension_numbers<[1], [0], [0], [1], [0, 0, 1, 1], [], []>} : vector<1x64xf32>, vector<64x256xf32>, vector<1x256xf32> -> vector<1x256xf32>
    %136 = arith.addf %134, %135 : vector<1x256xf32>
    %137 = vector.extract_strided_slice %136 {offsets = [0, 0], sizes = [1, 192], strides = [1, 1]} : vector<1x256xf32> to vector<1x192xf32>
    %138 = arith.negf %137 : vector<1x192xf32>
    %139 = math.exp %138 : vector<1x192xf32>
    %cst_34 = arith.constant 1.000000e+00 : f32
    %140 = vector.broadcast %cst_34 : f32 to vector<1x192xf32>
    %141 = arith.addf %140, %139 : vector<1x192xf32>
    %142 = arith.divf %140, %141 : vector<1x192xf32>
    %143 = vector.extract_strided_slice %136 {offsets = [0, 192], sizes = [1, 64], strides = [1, 1]} : vector<1x256xf32> to vector<1x64xf32>
    %144 = math.tanh %143 : vector<1x64xf32>
    %145 = vector.extract_strided_slice %142 {offsets = [0, 0], sizes = [1, 64], strides = [1, 1]} : vector<1x192xf32> to vector<1x64xf32>
    %146 = vector.extract_strided_slice %142 {offsets = [0, 64], sizes = [1, 64], strides = [1, 1]} : vector<1x192xf32> to vector<1x64xf32>
    %147 = vector.extract_strided_slice %142 {offsets = [0, 128], sizes = [1, 64], strides = [1, 1]} : vector<1x192xf32> to vector<1x64xf32>
    %148 = arith.mulf %146, %130 : vector<1x64xf32>
    %149 = arith.mulf %145, %144 : vector<1x64xf32>
    %150 = arith.addf %148, %149 : vector<1x64xf32>
    %151 = math.tanh %150 : vector<1x64xf32>
    %152 = arith.mulf %147, %151 : vector<1x64xf32>
    %c6 = arith.constant 6 : index
    %c0_35 = arith.constant 0 : index
    %153 = vector.load %arg12[%c6, %c0_35] : memref<8x64xf32, #tpu.memory_space<vmem>>, vector<1x64xf32>
    tpu.vector_store %arg12[%c6, %c0_35], %152 {strides = array<i32>} : memref<8x64xf32, #tpu.memory_space<vmem>>, vector<1x64xf32>,
    %154 = vector.extract_strided_slice %11 {offsets = [7, 0], sizes = [1, 256], strides = [1, 1]} : vector<8x256xf32> to vector<1x256xf32>
    %cst_36 = arith.constant dense<0.000000e+00> : vector<1x256xf32>
    %155 = tpu.matmul %152, %7, %cst_36 {dimension_numbers = #tpu.dot_dimension_numbers<[1], [0], [0], [1], [0, 0, 1, 1], [], []>} : vector<1x64xf32>, vector<64x256xf32>, vector<1x256xf32> -> vector<1x256xf32>
    %156 = arith.addf %154, %155 : vector<1x256xf32>
    %157 = vector.extract_strided_slice %156 {offsets = [0, 0], sizes = [1, 192], strides = [1, 1]} : vector<1x256xf32> to vector<1x192xf32>
    %158 = arith.negf %157 : vector<1x192xf32>
    %159 = math.exp %158 : vector<1x192xf32>
    %cst_37 = arith.constant 1.000000e+00 : f32
    %160 = vector.broadcast %cst_37 : f32 to vector<1x192xf32>
    %161 = arith.addf %160, %159 : vector<1x192xf32>
    %162 = arith.divf %160, %161 : vector<1x192xf32>
    %163 = vector.extract_strided_slice %156 {offsets = [0, 192], sizes = [1, 64], strides = [1, 1]} : vector<1x256xf32> to vector<1x64xf32>
    %164 = math.tanh %163 : vector<1x64xf32>
    %165 = vector.extract_strided_slice %162 {offsets = [0, 0], sizes = [1, 64], strides = [1, 1]} : vector<1x192xf32> to vector<1x64xf32>
    %166 = vector.extract_strided_slice %162 {offsets = [0, 64], sizes = [1, 64], strides = [1, 1]} : vector<1x192xf32> to vector<1x64xf32>
    %167 = vector.extract_strided_slice %162 {offsets = [0, 128], sizes = [1, 64], strides = [1, 1]} : vector<1x192xf32> to vector<1x64xf32>
    %168 = arith.mulf %166, %150 : vector<1x64xf32>
    %169 = arith.mulf %165, %164 : vector<1x64xf32>
    %170 = arith.addf %168, %169 : vector<1x64xf32>
    %171 = math.tanh %170 : vector<1x64xf32>
    %172 = arith.mulf %167, %171 : vector<1x64xf32>
    %c7 = arith.constant 7 : index
    %c0_38 = arith.constant 0 : index
    %173 = vector.load %arg12[%c7, %c0_38] : memref<8x64xf32, #tpu.memory_space<vmem>>, vector<1x64xf32>
    tpu.vector_store %arg12[%c7, %c0_38], %172 {strides = array<i32>} : memref<8x64xf32, #tpu.memory_space<vmem>>, vector<1x64xf32>,
    %c0_39 = arith.constant 0 : index
    %c0_40 = arith.constant 0 : index
    %174 = vector.load %arg12[%c0_39, %c0_40] : memref<8x64xf32, #tpu.memory_space<vmem>>, vector<8x64xf32>
    %c0_41 = arith.constant 0 : index
    %c0_42 = arith.constant 0 : index
    %175 = vector.load %arg6[%c0_41, %c0_42] : memref<64x256xf32, #tpu.memory_space<vmem>>, vector<64x256xf32>
    %c0_43 = arith.constant 0 : index
    %c0_44 = arith.constant 0 : index
    %176 = vector.load %arg7[%c0_43, %c0_44] : memref<64x256xf32, #tpu.memory_space<vmem>>, vector<64x256xf32>
    %c0_45 = arith.constant 0 : index
    %c0_46 = arith.constant 0 : index
    %177 = vector.load %arg8[%c0_45, %c0_46] : memref<1x256xf32, #tpu.memory_space<vmem>>, vector<1x256xf32>
    %cst_47 = arith.constant dense<0.000000e+00> : vector<8x256xf32>
    %178 = tpu.matmul %174, %175, %cst_47 {dimension_numbers = #tpu.dot_dimension_numbers<[1], [0], [0], [1], [0, 0, 1, 1], [], []>} : vector<8x64xf32>, vector<64x256xf32>, vector<8x256xf32> -> vector<8x256xf32>
    %179 = vector.broadcast %177 : vector<1x256xf32> to vector<8x256xf32>
    %180 = arith.addf %178, %179 : vector<8x256xf32>
    %cst_48 = arith.constant 1.000000e+00 : f32
    %181 = vector.broadcast %cst_48 : f32 to vector<1x64xf32>
    %cst_49 = arith.constant 1.000000e+00 : f32
    %182 = vector.broadcast %cst_49 : f32 to vector<1x64xf32>
    %183 = vector.extract_strided_slice %180 {offsets = [0, 0], sizes = [1, 256], strides = [1, 1]} : vector<8x256xf32> to vector<1x256xf32>
    %cst_50 = arith.constant dense<0.000000e+00> : vector<1x256xf32>
    %184 = tpu.matmul %181, %176, %cst_50 {dimension_numbers = #tpu.dot_dimension_numbers<[1], [0], [0], [1], [0, 0, 1, 1], [], []>} : vector<1x64xf32>, vector<64x256xf32>, vector<1x256xf32> -> vector<1x256xf32>
    %185 = arith.addf %183, %184 : vector<1x256xf32>
    %186 = vector.extract_strided_slice %185 {offsets = [0, 0], sizes = [1, 192], strides = [1, 1]} : vector<1x256xf32> to vector<1x192xf32>
    %187 = arith.negf %186 : vector<1x192xf32>
    %188 = math.exp %187 : vector<1x192xf32>
    %cst_51 = arith.constant 1.000000e+00 : f32
    %189 = vector.broadcast %cst_51 : f32 to vector<1x192xf32>
    %190 = arith.addf %189, %188 : vector<1x192xf32>
    %191 = arith.divf %189, %190 : vector<1x192xf32>
    %192 = vector.extract_strided_slice %185 {offsets = [0, 192], sizes = [1, 64], strides = [1, 1]} : vector<1x256xf32> to vector<1x64xf32>
    %193 = math.tanh %192 : vector<1x64xf32>
    %194 = vector.extract_strided_slice %191 {offsets = [0, 0], sizes = [1, 64], strides = [1, 1]} : vector<1x192xf32> to vector<1x64xf32>
    %195 = vector.extract_strided_slice %191 {offsets = [0, 64], sizes = [1, 64], strides = [1, 1]} : vector<1x192xf32> to vector<1x64xf32>
    %196 = vector.extract_strided_slice %191 {offsets = [0, 128], sizes = [1, 64], strides = [1, 1]} : vector<1x192xf32> to vector<1x64xf32>
    %197 = arith.mulf %195, %182 : vector<1x64xf32>
    %198 = arith.mulf %194, %193 : vector<1x64xf32>
    %199 = arith.addf %197, %198 : vector<1x64xf32>
    %200 = math.tanh %199 : vector<1x64xf32>
    %201 = arith.mulf %196, %200 : vector<1x64xf32>
    %c0_52 = arith.constant 0 : index
    %c0_53 = arith.constant 0 : index
    %202 = vector.load %arg12[%c0_52, %c0_53] : memref<8x64xf32, #tpu.memory_space<vmem>>, vector<1x64xf32>
    tpu.vector_store %arg12[%c0_52, %c0_53], %201 {strides = array<i32>} : memref<8x64xf32, #tpu.memory_space<vmem>>, vector<1x64xf32>,
    %203 = vector.extract_strided_slice %180 {offsets = [1, 0], sizes = [1, 256], strides = [1, 1]} : vector<8x256xf32> to vector<1x256xf32>
    %cst_54 = arith.constant dense<0.000000e+00> : vector<1x256xf32>
    %204 = tpu.matmul %201, %176, %cst_54 {dimension_numbers = #tpu.dot_dimension_numbers<[1], [0], [0], [1], [0, 0, 1, 1], [], []>} : vector<1x64xf32>, vector<64x256xf32>, vector<1x256xf32> -> vector<1x256xf32>
    %205 = arith.addf %203, %204 : vector<1x256xf32>
    %206 = vector.extract_strided_slice %205 {offsets = [0, 0], sizes = [1, 192], strides = [1, 1]} : vector<1x256xf32> to vector<1x192xf32>
    %207 = arith.negf %206 : vector<1x192xf32>
    %208 = math.exp %207 : vector<1x192xf32>
    %cst_55 = arith.constant 1.000000e+00 : f32
    %209 = vector.broadcast %cst_55 : f32 to vector<1x192xf32>
    %210 = arith.addf %209, %208 : vector<1x192xf32>
    %211 = arith.divf %209, %210 : vector<1x192xf32>
    %212 = vector.extract_strided_slice %205 {offsets = [0, 192], sizes = [1, 64], strides = [1, 1]} : vector<1x256xf32> to vector<1x64xf32>
    %213 = math.tanh %212 : vector<1x64xf32>
    %214 = vector.extract_strided_slice %211 {offsets = [0, 0], sizes = [1, 64], strides = [1, 1]} : vector<1x192xf32> to vector<1x64xf32>
    %215 = vector.extract_strided_slice %211 {offsets = [0, 64], sizes = [1, 64], strides = [1, 1]} : vector<1x192xf32> to vector<1x64xf32>
    %216 = vector.extract_strided_slice %211 {offsets = [0, 128], sizes = [1, 64], strides = [1, 1]} : vector<1x192xf32> to vector<1x64xf32>
    %217 = arith.mulf %215, %199 : vector<1x64xf32>
    %218 = arith.mulf %214, %213 : vector<1x64xf32>
    %219 = arith.addf %217, %218 : vector<1x64xf32>
    %220 = math.tanh %219 : vector<1x64xf32>
    %221 = arith.mulf %216, %220 : vector<1x64xf32>
    %c1_56 = arith.constant 1 : index
    %c0_57 = arith.constant 0 : index
    %222 = vector.load %arg12[%c1_56, %c0_57] : memref<8x64xf32, #tpu.memory_space<vmem>>, vector<1x64xf32>
    tpu.vector_store %arg12[%c1_56, %c0_57], %221 {strides = array<i32>} : memref<8x64xf32, #tpu.memory_space<vmem>>, vector<1x64xf32>,
    %223 = vector.extract_strided_slice %180 {offsets = [2, 0], sizes = [1, 256], strides = [1, 1]} : vector<8x256xf32> to vector<1x256xf32>
    %cst_58 = arith.constant dense<0.000000e+00> : vector<1x256xf32>
    %224 = tpu.matmul %221, %176, %cst_58 {dimension_numbers = #tpu.dot_dimension_numbers<[1], [0], [0], [1], [0, 0, 1, 1], [], []>} : vector<1x64xf32>, vector<64x256xf32>, vector<1x256xf32> -> vector<1x256xf32>
    %225 = arith.addf %223, %224 : vector<1x256xf32>
    %226 = vector.extract_strided_slice %225 {offsets = [0, 0], sizes = [1, 192], strides = [1, 1]} : vector<1x256xf32> to vector<1x192xf32>
    %227 = arith.negf %226 : vector<1x192xf32>
    %228 = math.exp %227 : vector<1x192xf32>
    %cst_59 = arith.constant 1.000000e+00 : f32
    %229 = vector.broadcast %cst_59 : f32 to vector<1x192xf32>
    %230 = arith.addf %229, %228 : vector<1x192xf32>
    %231 = arith.divf %229, %230 : vector<1x192xf32>
    %232 = vector.extract_strided_slice %225 {offsets = [0, 192], sizes = [1, 64], strides = [1, 1]} : vector<1x256xf32> to vector<1x64xf32>
    %233 = math.tanh %232 : vector<1x64xf32>
    %234 = vector.extract_strided_slice %231 {offsets = [0, 0], sizes = [1, 64], strides = [1, 1]} : vector<1x192xf32> to vector<1x64xf32>
    %235 = vector.extract_strided_slice %231 {offsets = [0, 64], sizes = [1, 64], strides = [1, 1]} : vector<1x192xf32> to vector<1x64xf32>
    %236 = vector.extract_strided_slice %231 {offsets = [0, 128], sizes = [1, 64], strides = [1, 1]} : vector<1x192xf32> to vector<1x64xf32>
    %237 = arith.mulf %235, %219 : vector<1x64xf32>
    %238 = arith.mulf %234, %233 : vector<1x64xf32>
    %239 = arith.addf %237, %238 : vector<1x64xf32>
    %240 = math.tanh %239 : vector<1x64xf32>
    %241 = arith.mulf %236, %240 : vector<1x64xf32>
    %c2_60 = arith.constant 2 : index
    %c0_61 = arith.constant 0 : index
    %242 = vector.load %arg12[%c2_60, %c0_61] : memref<8x64xf32, #tpu.memory_space<vmem>>, vector<1x64xf32>
    tpu.vector_store %arg12[%c2_60, %c0_61], %241 {strides = array<i32>} : memref<8x64xf32, #tpu.memory_space<vmem>>, vector<1x64xf32>,
    %243 = vector.extract_strided_slice %180 {offsets = [3, 0], sizes = [1, 256], strides = [1, 1]} : vector<8x256xf32> to vector<1x256xf32>
    %cst_62 = arith.constant dense<0.000000e+00> : vector<1x256xf32>
    %244 = tpu.matmul %241, %176, %cst_62 {dimension_numbers = #tpu.dot_dimension_numbers<[1], [0], [0], [1], [0, 0, 1, 1], [], []>} : vector<1x64xf32>, vector<64x256xf32>, vector<1x256xf32> -> vector<1x256xf32>
    %245 = arith.addf %243, %244 : vector<1x256xf32>
    %246 = vector.extract_strided_slice %245 {offsets = [0, 0], sizes = [1, 192], strides = [1, 1]} : vector<1x256xf32> to vector<1x192xf32>
    %247 = arith.negf %246 : vector<1x192xf32>
    %248 = math.exp %247 : vector<1x192xf32>
    %cst_63 = arith.constant 1.000000e+00 : f32
    %249 = vector.broadcast %cst_63 : f32 to vector<1x192xf32>
    %250 = arith.addf %249, %248 : vector<1x192xf32>
    %251 = arith.divf %249, %250 : vector<1x192xf32>
    %252 = vector.extract_strided_slice %245 {offsets = [0, 192], sizes = [1, 64], strides = [1, 1]} : vector<1x256xf32> to vector<1x64xf32>
    %253 = math.tanh %252 : vector<1x64xf32>
    %254 = vector.extract_strided_slice %251 {offsets = [0, 0], sizes = [1, 64], strides = [1, 1]} : vector<1x192xf32> to vector<1x64xf32>
    %255 = vector.extract_strided_slice %251 {offsets = [0, 64], sizes = [1, 64], strides = [1, 1]} : vector<1x192xf32> to vector<1x64xf32>
    %256 = vector.extract_strided_slice %251 {offsets = [0, 128], sizes = [1, 64], strides = [1, 1]} : vector<1x192xf32> to vector<1x64xf32>
    %257 = arith.mulf %255, %239 : vector<1x64xf32>
    %258 = arith.mulf %254, %253 : vector<1x64xf32>
    %259 = arith.addf %257, %258 : vector<1x64xf32>
    %260 = math.tanh %259 : vector<1x64xf32>
    %261 = arith.mulf %256, %260 : vector<1x64xf32>
    %c3_64 = arith.constant 3 : index
    %c0_65 = arith.constant 0 : index
    %262 = vector.load %arg12[%c3_64, %c0_65] : memref<8x64xf32, #tpu.memory_space<vmem>>, vector<1x64xf32>
    tpu.vector_store %arg12[%c3_64, %c0_65], %261 {strides = array<i32>} : memref<8x64xf32, #tpu.memory_space<vmem>>, vector<1x64xf32>,
    %263 = vector.extract_strided_slice %180 {offsets = [4, 0], sizes = [1, 256], strides = [1, 1]} : vector<8x256xf32> to vector<1x256xf32>
    %cst_66 = arith.constant dense<0.000000e+00> : vector<1x256xf32>
    %264 = tpu.matmul %261, %176, %cst_66 {dimension_numbers = #tpu.dot_dimension_numbers<[1], [0], [0], [1], [0, 0, 1, 1], [], []>} : vector<1x64xf32>, vector<64x256xf32>, vector<1x256xf32> -> vector<1x256xf32>
    %265 = arith.addf %263, %264 : vector<1x256xf32>
    %266 = vector.extract_strided_slice %265 {offsets = [0, 0], sizes = [1, 192], strides = [1, 1]} : vector<1x256xf32> to vector<1x192xf32>
    %267 = arith.negf %266 : vector<1x192xf32>
    %268 = math.exp %267 : vector<1x192xf32>
    %cst_67 = arith.constant 1.000000e+00 : f32
    %269 = vector.broadcast %cst_67 : f32 to vector<1x192xf32>
    %270 = arith.addf %269, %268 : vector<1x192xf32>
    %271 = arith.divf %269, %270 : vector<1x192xf32>
    %272 = vector.extract_strided_slice %265 {offsets = [0, 192], sizes = [1, 64], strides = [1, 1]} : vector<1x256xf32> to vector<1x64xf32>
    %273 = math.tanh %272 : vector<1x64xf32>
    %274 = vector.extract_strided_slice %271 {offsets = [0, 0], sizes = [1, 64], strides = [1, 1]} : vector<1x192xf32> to vector<1x64xf32>
    %275 = vector.extract_strided_slice %271 {offsets = [0, 64], sizes = [1, 64], strides = [1, 1]} : vector<1x192xf32> to vector<1x64xf32>
    %276 = vector.extract_strided_slice %271 {offsets = [0, 128], sizes = [1, 64], strides = [1, 1]} : vector<1x192xf32> to vector<1x64xf32>
    %277 = arith.mulf %275, %259 : vector<1x64xf32>
    %278 = arith.mulf %274, %273 : vector<1x64xf32>
    %279 = arith.addf %277, %278 : vector<1x64xf32>
    %280 = math.tanh %279 : vector<1x64xf32>
    %281 = arith.mulf %276, %280 : vector<1x64xf32>
    %c4_68 = arith.constant 4 : index
    %c0_69 = arith.constant 0 : index
    %282 = vector.load %arg12[%c4_68, %c0_69] : memref<8x64xf32, #tpu.memory_space<vmem>>, vector<1x64xf32>
    tpu.vector_store %arg12[%c4_68, %c0_69], %281 {strides = array<i32>} : memref<8x64xf32, #tpu.memory_space<vmem>>, vector<1x64xf32>,
    %283 = vector.extract_strided_slice %180 {offsets = [5, 0], sizes = [1, 256], strides = [1, 1]} : vector<8x256xf32> to vector<1x256xf32>
    %cst_70 = arith.constant dense<0.000000e+00> : vector<1x256xf32>
    %284 = tpu.matmul %281, %176, %cst_70 {dimension_numbers = #tpu.dot_dimension_numbers<[1], [0], [0], [1], [0, 0, 1, 1], [], []>} : vector<1x64xf32>, vector<64x256xf32>, vector<1x256xf32> -> vector<1x256xf32>
    %285 = arith.addf %283, %284 : vector<1x256xf32>
    %286 = vector.extract_strided_slice %285 {offsets = [0, 0], sizes = [1, 192], strides = [1, 1]} : vector<1x256xf32> to vector<1x192xf32>
    %287 = arith.negf %286 : vector<1x192xf32>
    %288 = math.exp %287 : vector<1x192xf32>
    %cst_71 = arith.constant 1.000000e+00 : f32
    %289 = vector.broadcast %cst_71 : f32 to vector<1x192xf32>
    %290 = arith.addf %289, %288 : vector<1x192xf32>
    %291 = arith.divf %289, %290 : vector<1x192xf32>
    %292 = vector.extract_strided_slice %285 {offsets = [0, 192], sizes = [1, 64], strides = [1, 1]} : vector<1x256xf32> to vector<1x64xf32>
    %293 = math.tanh %292 : vector<1x64xf32>
    %294 = vector.extract_strided_slice %291 {offsets = [0, 0], sizes = [1, 64], strides = [1, 1]} : vector<1x192xf32> to vector<1x64xf32>
    %295 = vector.extract_strided_slice %291 {offsets = [0, 64], sizes = [1, 64], strides = [1, 1]} : vector<1x192xf32> to vector<1x64xf32>
    %296 = vector.extract_strided_slice %291 {offsets = [0, 128], sizes = [1, 64], strides = [1, 1]} : vector<1x192xf32> to vector<1x64xf32>
    %297 = arith.mulf %295, %279 : vector<1x64xf32>
    %298 = arith.mulf %294, %293 : vector<1x64xf32>
    %299 = arith.addf %297, %298 : vector<1x64xf32>
    %300 = math.tanh %299 : vector<1x64xf32>
    %301 = arith.mulf %296, %300 : vector<1x64xf32>
    %c5_72 = arith.constant 5 : index
    %c0_73 = arith.constant 0 : index
    %302 = vector.load %arg12[%c5_72, %c0_73] : memref<8x64xf32, #tpu.memory_space<vmem>>, vector<1x64xf32>
    tpu.vector_store %arg12[%c5_72, %c0_73], %301 {strides = array<i32>} : memref<8x64xf32, #tpu.memory_space<vmem>>, vector<1x64xf32>,
    %303 = vector.extract_strided_slice %180 {offsets = [6, 0], sizes = [1, 256], strides = [1, 1]} : vector<8x256xf32> to vector<1x256xf32>
    %cst_74 = arith.constant dense<0.000000e+00> : vector<1x256xf32>
    %304 = tpu.matmul %301, %176, %cst_74 {dimension_numbers = #tpu.dot_dimension_numbers<[1], [0], [0], [1], [0, 0, 1, 1], [], []>} : vector<1x64xf32>, vector<64x256xf32>, vector<1x256xf32> -> vector<1x256xf32>
    %305 = arith.addf %303, %304 : vector<1x256xf32>
    %306 = vector.extract_strided_slice %305 {offsets = [0, 0], sizes = [1, 192], strides = [1, 1]} : vector<1x256xf32> to vector<1x192xf32>
    %307 = arith.negf %306 : vector<1x192xf32>
    %308 = math.exp %307 : vector<1x192xf32>
    %cst_75 = arith.constant 1.000000e+00 : f32
    %309 = vector.broadcast %cst_75 : f32 to vector<1x192xf32>
    %310 = arith.addf %309, %308 : vector<1x192xf32>
    %311 = arith.divf %309, %310 : vector<1x192xf32>
    %312 = vector.extract_strided_slice %305 {offsets = [0, 192], sizes = [1, 64], strides = [1, 1]} : vector<1x256xf32> to vector<1x64xf32>
    %313 = math.tanh %312 : vector<1x64xf32>
    %314 = vector.extract_strided_slice %311 {offsets = [0, 0], sizes = [1, 64], strides = [1, 1]} : vector<1x192xf32> to vector<1x64xf32>
    %315 = vector.extract_strided_slice %311 {offsets = [0, 64], sizes = [1, 64], strides = [1, 1]} : vector<1x192xf32> to vector<1x64xf32>
    %316 = vector.extract_strided_slice %311 {offsets = [0, 128], sizes = [1, 64], strides = [1, 1]} : vector<1x192xf32> to vector<1x64xf32>
    %317 = arith.mulf %315, %299 : vector<1x64xf32>
    %318 = arith.mulf %314, %313 : vector<1x64xf32>
    %319 = arith.addf %317, %318 : vector<1x64xf32>
    %320 = math.tanh %319 : vector<1x64xf32>
    %321 = arith.mulf %316, %320 : vector<1x64xf32>
    %c6_76 = arith.constant 6 : index
    %c0_77 = arith.constant 0 : index
    %322 = vector.load %arg12[%c6_76, %c0_77] : memref<8x64xf32, #tpu.memory_space<vmem>>, vector<1x64xf32>
    tpu.vector_store %arg12[%c6_76, %c0_77], %321 {strides = array<i32>} : memref<8x64xf32, #tpu.memory_space<vmem>>, vector<1x64xf32>,
    %323 = vector.extract_strided_slice %180 {offsets = [7, 0], sizes = [1, 256], strides = [1, 1]} : vector<8x256xf32> to vector<1x256xf32>
    %cst_78 = arith.constant dense<0.000000e+00> : vector<1x256xf32>
    %324 = tpu.matmul %321, %176, %cst_78 {dimension_numbers = #tpu.dot_dimension_numbers<[1], [0], [0], [1], [0, 0, 1, 1], [], []>} : vector<1x64xf32>, vector<64x256xf32>, vector<1x256xf32> -> vector<1x256xf32>
    %325 = arith.addf %323, %324 : vector<1x256xf32>
    %326 = vector.extract_strided_slice %325 {offsets = [0, 0], sizes = [1, 192], strides = [1, 1]} : vector<1x256xf32> to vector<1x192xf32>
    %327 = arith.negf %326 : vector<1x192xf32>
    %328 = math.exp %327 : vector<1x192xf32>
    %cst_79 = arith.constant 1.000000e+00 : f32
    %329 = vector.broadcast %cst_79 : f32 to vector<1x192xf32>
    %330 = arith.addf %329, %328 : vector<1x192xf32>
    %331 = arith.divf %329, %330 : vector<1x192xf32>
    %332 = vector.extract_strided_slice %325 {offsets = [0, 192], sizes = [1, 64], strides = [1, 1]} : vector<1x256xf32> to vector<1x64xf32>
    %333 = math.tanh %332 : vector<1x64xf32>
    %334 = vector.extract_strided_slice %331 {offsets = [0, 0], sizes = [1, 64], strides = [1, 1]} : vector<1x192xf32> to vector<1x64xf32>
    %335 = vector.extract_strided_slice %331 {offsets = [0, 64], sizes = [1, 64], strides = [1, 1]} : vector<1x192xf32> to vector<1x64xf32>
    %336 = vector.extract_strided_slice %331 {offsets = [0, 128], sizes = [1, 64], strides = [1, 1]} : vector<1x192xf32> to vector<1x64xf32>
    %337 = arith.mulf %335, %319 : vector<1x64xf32>
    %338 = arith.mulf %334, %333 : vector<1x64xf32>
    %339 = arith.addf %337, %338 : vector<1x64xf32>
    %340 = math.tanh %339 : vector<1x64xf32>
    %341 = arith.mulf %336, %340 : vector<1x64xf32>
    %c7_80 = arith.constant 7 : index
    %c0_81 = arith.constant 0 : index
    %342 = vector.load %arg12[%c7_80, %c0_81] : memref<8x64xf32, #tpu.memory_space<vmem>>, vector<1x64xf32>
    tpu.vector_store %arg12[%c7_80, %c0_81], %341 {strides = array<i32>} : memref<8x64xf32, #tpu.memory_space<vmem>>, vector<1x64xf32>,
    %c0_82 = arith.constant 0 : index
    %c0_83 = arith.constant 0 : index
    %343 = vector.load %arg12[%c0_82, %c0_83] : memref<8x64xf32, #tpu.memory_space<vmem>>, vector<8x64xf32>
    %c0_84 = arith.constant 0 : index
    %c0_85 = arith.constant 0 : index
    %344 = vector.load %arg9[%c0_84, %c0_85] : memref<64x72xf32, #tpu.memory_space<vmem>>, vector<64x72xf32>
    %cst_86 = arith.constant dense<0.000000e+00> : vector<8x72xf32>
    %345 = tpu.matmul %343, %344, %cst_86 {dimension_numbers = #tpu.dot_dimension_numbers<[1], [0], [0], [1], [0, 0, 1, 1], [], []>} : vector<8x64xf32>, vector<64x72xf32>, vector<8x72xf32> -> vector<8x72xf32>
    %c0_87 = arith.constant 0 : index
    %c0_88 = arith.constant 0 : index
    %346 = vector.load %arg10[%c0_87, %c0_88] : memref<1x72xf32, #tpu.memory_space<vmem>>, vector<1x72xf32>
    %347 = vector.broadcast %346 : vector<1x72xf32> to vector<8x72xf32>
    %348 = arith.addf %345, %347 : vector<8x72xf32>
    %cst_89 = arith.constant 0.000000e+00 : f32
    %349 = vector.broadcast %cst_89 : f32 to vector<8x72xf32>
    %350 = arith.cmpf oge, %348, %349 : vector<8x72xf32>
    %cst_90 = arith.constant 0.00999999977 : f32
    %351 = vector.broadcast %cst_90 : f32 to vector<8x72xf32>
    %352 = arith.mulf %351, %348 : vector<8x72xf32>
    %353 = arith.select %350, %348, %352 : vector<8x72xi1>, vector<8x72xf32>
    %354 = math.tanh %353 : vector<8x72xf32>
    %355 = tpu.iota {dimensions = array<i32: 1>} : vector<8x72xi32>
    %c36_i32 = arith.constant 36 : i32
    %356 = vector.broadcast %c36_i32 : i32 to vector<8x72xi32>
    %357 = arith.cmpi sge, %355, %356 : vector<8x72xi32>
    %358 = arith.select %357, %354, %353 : vector<8x72xi1>, vector<8x72xf32>
    %c0_91 = arith.constant 0 : index
    %c0_92 = arith.constant 0 : index
    %359 = vector.load %arg11[%c0_91, %c0_92] : memref<8x72xf32, #tpu.memory_space<vmem>>, vector<8x72xf32>
    tpu.vector_store %arg11[%c0_91, %c0_92], %358 {strides = array<i32>} : memref<8x72xf32, #tpu.memory_space<vmem>>, vector<8x72xf32>,
    return
  }
}

</mosaic_0001>

<llo_original>
// kernel: tpu_custom_call.1
$region0: #{tpu_custom_call.1}
  #allocation0 [shape = 'u32[]', space=smem, size = 0x4, offset = 0x4, fixed_abs, tag = 'smem constant byte address 0x4 - core index']
  #allocation1 [shape = 'u32[144,128]{1,0:T(1,128)}', space=vmem, size = 0x12000, scoped, tag = 'internal scratch']
  #allocation2 [shape = 'f32[8,64]{1,0:T(8,128)}', space=vmem, size = 0x1000, scoped, tag = 'scratch operand']
  %s0 = inlined_call_operand.hbm [shape: f32[8,159], index: 0, kind: input, shape index: {}]
  %s1 = inlined_call_operand.vmem [shape: f32[159,32], index: 1, kind: input, shape index: {}]
  %s2 = inlined_call_operand.hbm [shape: f32[1,32], index: 2, kind: input, shape index: {}]
  %s3 = inlined_call_operand.vmem [shape: f32[32,256], index: 3, kind: input, shape index: {}]
  %s4 = inlined_call_operand.vmem [shape: f32[64,256], index: 4, kind: input, shape index: {}]
  %s5 = inlined_call_operand.vmem [shape: f32[1,256], index: 5, kind: input, shape index: {}]
  %s6 = inlined_call_operand.hbm [shape: f32[64,256], index: 6, kind: input, shape index: {}]
  %s7 = inlined_call_operand.hbm [shape: f32[64,256], index: 7, kind: input, shape index: {}]
  %s8 = inlined_call_operand.hbm [shape: f32[1,256], index: 8, kind: input, shape index: {}]
  %s9 = inlined_call_operand.vmem [shape: f32[64,72], index: 9, kind: input, shape index: {}]
  %s10 = inlined_call_operand.vmem [shape: f32[1,72], index: 10, kind: input, shape index: {}]
  %s11 = inlined_call_operand.hbm [shape: f32[8,72], index: 11, kind: output, shape index: {}]
  %s12 = sld [smem:[#allocation0]]
  $region74: #{tpu_custom_call.1} parent=0
    _
  %s14 = ssub.s32 1, %s12
  %s15 = scalar_select 0, %s14, %s12
  $region1: #{tpu_custom_call.1} parent=0
    #allocation3 [shape = 'u8[8192]{0}', space=vmem, size = 0x2000, scoped, tag = 'input window, operand 0, single buffered']
    #allocation4 [shape = 's32[1]{0}', space=sflag, size = 0x4, scoped, tag = 'scoped memory for tpu_custom_call.1']
    #allocation5 [shape = 's32[1]{0}', space=sflag, size = 0x4, scoped, tag = 'scoped memory for tpu_custom_call.1']
    #allocation6 [shape = 'u8[512]{0}', space=vmem, size = 0x400, scoped, tag = 'input window, operand 2, single buffered']
    #allocation7 [shape = 's32[1]{0}', space=sflag, size = 0x4, scoped, tag = 'scoped memory for tpu_custom_call.1']
    #allocation8 [shape = 'u8[65536]{0}', space=vmem, size = 0x10000, scoped, tag = 'input window, operand 6, single buffered']
    #allocation9 [shape = 'u8[65536]{0}', space=vmem, size = 0x10000, scoped, tag = 'input window, operand 7, single buffered']
    #allocation10 [shape = 's32[1]{0}', space=sflag, size = 0x4, scoped, tag = 'scoped memory for tpu_custom_call.1']
    #allocation11 [shape = 'u8[1024]{0}', space=vmem, size = 0x400, scoped, tag = 'input window, operand 8, single buffered']
    #allocation12 [shape = 'u8[4096]{0}', space=vmem, size = 0x1000, scoped, tag = 'output window, operand 0, single buffered']
    %16 = vsyncpa [#allocation4], 0
    %17 = vsyncpa [#allocation7], 0
    %18 = vsyncpa [#allocation10], 0
    %19 = vsyncpa [#allocation5], 0
    // Predicated region
    $region2: #{tpu_custom_call.1} parent=1 // pred_check
      _
    $region3: #{tpu_custom_call.1} parent=1 // pred_check_branch
      %21 = sbr.rel (0) target = $region5
    $region4: #{tpu_custom_call.1} parent=1 // pred_region
      %s23 = ssub.s32 256, 256
      %24 = vsyncadd [#allocation4], %s23
      %s26 = sshll.u32 [#allocation3], 4
      %s27 = int_to_ptr.vmem [resolvable:$true] %s26
      %29 = dma.hbm_to_vmem [thread:$0]  %s0, 256, %s27, [#allocation4]
    $region5: #{tpu_custom_call.1} parent=1 // pred_fallthru
      _
    // Predicated region
    $region6: #{tpu_custom_call.1} parent=1 // pred_check
      _
    $region7: #{tpu_custom_call.1} parent=1 // pred_check_branch
      %31 = sbr.rel (0) target = $region9
    $region8: #{tpu_custom_call.1} parent=1 // pred_region
      _
    $region9: #{tpu_custom_call.1} parent=1 // pred_fallthru
      _
    // Predicated region
    $region10: #{tpu_custom_call.1} parent=1 // pred_check
      _
    $region11: #{tpu_custom_call.1} parent=1 // pred_check_branch
      %33 = sbr.rel (0) target = $region13
    $region12: #{tpu_custom_call.1} parent=1 // pred_region
      %s35 = ssub.s32 16, 16
      %36 = vsyncadd [#allocation7], %s35
      %s38 = sshll.u32 [#allocation6], 4
      %s39 = int_to_ptr.vmem [resolvable:$true] %s38
      %41 = dma.hbm_to_vmem [thread:$0]  %s2, 16, %s39, [#allocation7]
    $region13: #{tpu_custom_call.1} parent=1 // pred_fallthru
      _
    // Predicated region
    $region14: #{tpu_custom_call.1} parent=1 // pred_check
      _
    $region15: #{tpu_custom_call.1} parent=1 // pred_check_branch
      %43 = sbr.rel (0) target = $region17
    $region16: #{tpu_custom_call.1} parent=1 // pred_region
      _
    $region17: #{tpu_custom_call.1} parent=1 // pred_fallthru
      _
    // Predicated region
    $region18: #{tpu_custom_call.1} parent=1 // pred_check
      _
    $region19: #{tpu_custom_call.1} parent=1 // pred_check_branch
      %45 = sbr.rel (0) target = $region21
    $region20: #{tpu_custom_call.1} parent=1 // pred_region
      _
    $region21: #{tpu_custom_call.1} parent=1 // pred_fallthru
      _
    // Predicated region
    $region22: #{tpu_custom_call.1} parent=1 // pred_check
      _
    $region23: #{tpu_custom_call.1} parent=1 // pred_check_branch
      %47 = sbr.rel (0) target = $region25
    $region24: #{tpu_custom_call.1} parent=1 // pred_region
      _
    $region25: #{tpu_custom_call.1} parent=1 // pred_fallthru
      _
    // Predicated region
    $region26: #{tpu_custom_call.1} parent=1 // pred_check
      _
    $region27: #{tpu_custom_call.1} parent=1 // pred_check_branch
      %49 = sbr.rel (0) target = $region29
    $region28: #{tpu_custom_call.1} parent=1 // pred_region
      %s51 = ssub.s32 2048, 2048
      %52 = vsyncadd [#allocation7], %s51
      %s53 = sshll.u32 [#allocation8], 4
      %s54 = int_to_ptr.vmem [resolvable:$true] %s53
      %59 = dma.hbm_to_vmem [thread:$0]  %s6, 2048, %s54, [#allocation7], 256, 256, 16
    $region29: #{tpu_custom_call.1} parent=1 // pred_fallthru
      _
    // Predicated region
    $region30: #{tpu_custom_call.1} parent=1 // pred_check
      _
    $region31: #{tpu_custom_call.1} parent=1 // pred_check_branch
      %61 = sbr.rel (0) target = $region33
    $region32: #{tpu_custom_call.1} parent=1 // pred_region
      %s63 = ssub.s32 2048, 2048
      %64 = vsyncadd [#allocation10], %s63
      %s65 = sshll.u32 [#allocation9], 4
      %s66 = int_to_ptr.vmem [resolvable:$true] %s65
      %71 = dma.hbm_to_vmem [thread:$0]  %s7, 2048, %s66, [#allocation10], 256, 256, 16
    $region33: #{tpu_custom_call.1} parent=1 // pred_fallthru
      _
    // Predicated region
    $region34: #{tpu_custom_call.1} parent=1 // pred_check
      _
    $region35: #{tpu_custom_call.1} parent=1 // pred_check_branch
      %73 = sbr.rel (0) target = $region37
    $region36: #{tpu_custom_call.1} parent=1 // pred_region
      %s75 = ssub.s32 32, 32
      %76 = vsyncadd [#allocation10], %s75
      %s78 = sshll.u32 [#allocation11], 4
      %s79 = int_to_ptr.vmem [resolvable:$true] %s78
      %81 = dma.hbm_to_vmem [thread:$0]  %s8, 32, %s79, [#allocation10]
    $region37: #{tpu_custom_call.1} parent=1 // pred_fallthru
      _
    // Predicated region
    $region38: #{tpu_custom_call.1} parent=1 // pred_check
      _
    $region39: #{tpu_custom_call.1} parent=1 // pred_check_branch
      %83 = sbr.rel (0) target = $region41
    $region40: #{tpu_custom_call.1} parent=1 // pred_region
      _
    $region41: #{tpu_custom_call.1} parent=1 // pred_fallthru
      _
    // Predicated region
    $region42: #{tpu_custom_call.1} parent=1 // pred_check
      _
    $region43: #{tpu_custom_call.1} parent=1 // pred_check_branch
      %85 = sbr.rel (0) target = $region45
    $region44: #{tpu_custom_call.1} parent=1 // pred_region
      _
    $region45: #{tpu_custom_call.1} parent=1 // pred_fallthru
      _
    // Predicated region
    $region46: #{tpu_custom_call.1} parent=1 // pred_check
      _
    $region47: #{tpu_custom_call.1} parent=1 // pred_check_branch
      %87 = sbr.rel (0) target = $region49
    $region48: #{tpu_custom_call.1} parent=1 // pred_region
      %88 = dma.done [#allocation4], 256
    $region49: #{tpu_custom_call.1} parent=1 // pred_fallthru
      _
    // Predicated region
    $region50: #{tpu_custom_call.1} parent=1 // pred_check
      _
    $region51: #{tpu_custom_call.1} parent=1 // pred_check_branch
      %90 = sbr.rel (0) target = $region53
    $region52: #{tpu_custom_call.1} parent=1 // pred_region
      %91 = dma.done [#allocation7], 16
    $region53: #{tpu_custom_call.1} parent=1 // pred_fallthru
      _
    // Predicated region
    $region54: #{tpu_custom_call.1} parent=1 // pred_check
      _
    $region55: #{tpu_custom_call.1} parent=1 // pred_check_branch
      %93 = sbr.rel (0) target = $region57
    $region56: #{tpu_custom_call.1} parent=1 // pred_region
      %94 = dma.done [#allocation7], 2048
    $region57: #{tpu_custom_call.1} parent=1 // pred_fallthru
      _
    // Predicated region
    $region58: #{tpu_custom_call.1} parent=1 // pred_check
      _
    $region59: #{tpu_custom_call.1} parent=1 // pred_check_branch
      %96 = sbr.rel (0) target = $region61
    $region60: #{tpu_custom_call.1} parent=1 // pred_region
      %97 = dma.done [#allocation10], 2048
    $region61: #{tpu_custom_call.1} parent=1 // pred_fallthru
      _
    // Predicated region
    $region62: #{tpu_custom_call.1} parent=1 // pred_check
      _
    $region63: #{tpu_custom_call.1} parent=1 // pred_check_branch
      %99 = sbr.rel (0) target = $region65
    $region64: #{tpu_custom_call.1} parent=1 // pred_region
      %100 = dma.done [#allocation10], 32
    $region65: #{tpu_custom_call.1} parent=1 // pred_fallthru
      _
    %v101 = vld [vmem:[#allocation3] sm:$0xff]
    %v102 = vld [vmem:[#allocation3 + $0x8] sm:$0xff]
    %v103 = vld [vmem:[%s1] sm:$0xff]
    %v104 = vld [vmem:[%s1 + $0x8] sm:$0xff]
    %v105 = vld [vmem:[%s1 + $0x10] sm:$0xff]
    %v106 = vld [vmem:[%s1 + $0x18] sm:$0xff]
    %v107 = vld [vmem:[%s1 + $0x20] sm:$0xff]
    %v108 = vld [vmem:[%s1 + $0x28] sm:$0xff]
    %v109 = vld [vmem:[%s1 + $0x30] sm:$0xff]
    %v110 = vld [vmem:[%s1 + $0x38] sm:$0xff]
    %v111 = vld [vmem:[%s1 + $0x40] sm:$0xff]
    %v112 = vld [vmem:[%s1 + $0x48] sm:$0xff]
    %v113 = vld [vmem:[%s1 + $0x50] sm:$0xff]
    %v114 = vld [vmem:[%s1 + $0x58] sm:$0xff]
    %v115 = vld [vmem:[%s1 + $0x60] sm:$0xff]
    %v116 = vld [vmem:[%s1 + $0x68] sm:$0xff]
    %v117 = vld [vmem:[%s1 + $0x70] sm:$0xff]
    %v118 = vld [vmem:[%s1 + $0x78] sm:$0xff]
    %v119 = vld [vmem:[%s1 + $0x80] sm:$0xff]
    %v120 = vld [vmem:[%s1 + $0x88] sm:$0xff]
    %v121 = vld [vmem:[%s1 + $0x90] sm:$0xff]
    %v122 = vld [vmem:[%s1 + $0x98] sm:$0x7f]
    %v123 = vld [vmem:[#allocation6] sm:$0x1]
    %v125 = vlaneseq
    %v126 = vshrl.u32 %v125, 7
    %v127 = vsub.s32 0, %v126
    %v128 = vrot.slane %v123, %v127
    %vm130 = vcmask 252928
    %v132 = vsel %vm130, %v102, 0
    %vm134 = vcmask 1046528
    %v136 = vsel %vm134, %v122, 0
    %138 = vmatprep.subr.mxu0 0.0
    %139 = vmatpush1.msra.mxu0 %v103
    %140 = vmatprep.subr.mxu0 0.0
    %141 = vmatpush1.msra.mxu0 %v104
    %142 = vmatprep.subr.mxu0 0.0
    %143 = vmatpush1.msra.mxu0 %v105
    %144 = vmatprep.subr.mxu0 0.0
    %145 = vmatpush1.msra.mxu0 %v106
    %146 = vmatprep.subr.mxu0 0.0
    %147 = vmatpush1.msra.mxu0 %v107
    %148 = vmatprep.subr.mxu0 0.0
    %149 = vmatpush1.msra.mxu0 %v108
    %150 = vmatprep.subr.mxu0 0.0
    %151 = vmatpush1.msra.mxu0 %v109
    %152 = vmatprep.subr.mxu0 0.0
    %153 = vmatpush1.msra.mxu0 %v110
    %154 = vmatprep.subr.mxu0 0.0
    %155 = vmatpush1.msra.mxu0 %v111
    %156 = vmatprep.subr.mxu0 0.0
    %157 = vmatpush1.msra.mxu0 %v112
    %158 = vmatprep.subr.mxu0 0.0
    %159 = vmatpush1.msra.mxu0 %v113
    %160 = vmatprep.subr.mxu0 0.0
    %161 = vmatpush1.msra.mxu0 %v114
    %162 = vmatprep.subr.mxu0 0.0
    %163 = vmatpush1.msra.mxu0 %v115
    %164 = vmatprep.subr.mxu0 0.0
    %165 = vmatpush1.msra.mxu0 %v116
    %166 = vmatprep.subr.mxu0 0.0
    %167 = vmatpush1.msra.mxu0 %v117
    %168 = vmatprep.subr.mxu0 0.0
    %169 = vmatpush1.msra.mxu0 %v118
    %170 = vmatprep.subr.mxu0 0.0
    %171 = vmatpush1.msra.mxu0 %v119
    %172 = vmatprep.subr.mxu0 0.0
    %173 = vmatpush1.msra.mxu0 %v120
    %174 = vmatprep.subr.mxu0 0.0
    %175 = vmatpush1.msra.mxu0 %v121
    %176 = vmatprep.subr.mxu0 0.0
    %177 = vmatpush1.msra.mxu0 %v136
    %178 = vmatprep.subr.mxu0 0.0
    %179 = vmatpush1.msra.mxu0 0.0
    %180 = vmatprep.subr.mxu0 0.0
    %181 = vmatpush1.msra.mxu0 0.0
    %182 = vmatprep.subr.mxu0 0.0
    %183 = vmatpush1.msra.mxu0 0.0
    %184 = vmatprep.subr.mxu0 0.0
    %185 = vmatpush1.msra.mxu0 0.0
    %186 = vmatprep.subr.mxu0 0.0
    %187 = vmatpush1.msra.mxu0 0.0
    %188 = vmatprep.subr.mxu0 0.0
    %189 = vmatpush1.msra.mxu0 0.0
    %190 = vmatprep.subr.mxu0 0.0
    %191 = vmatpush1.msra.mxu0 0.0
    %192 = vmatprep.subr.mxu0 0.0
    %193 = vmatpush1.msra.mxu0 0.0
    %194 = vmatprep.subr.mxu0 0.0
    %195 = vmatpush1.msra.mxu0 0.0
    %196 = vmatprep.subr.mxu0 0.0
    %197 = vmatpush1.msra.mxu0 0.0
    %198 = vmatprep.subr.mxu0 0.0
    %199 = vmatpush1.msra.mxu0 0.0
    %200 = vmatprep.subr.mxu0 0.0
    %201 = vmatpush1.msra.mxu0 0.0
    %202 = vmatprep.mubr.f32.mxu0 %v132
    %203 = vmatmul.mubr.f32.gmra.mrb[0].mxu0 %v101
    %v204 = vpop.f32.mrb[0].mxu0
    %v205 = vadd.f32 %v128, %v204
    %v206 = vpop.f32.mrb[0].mxu0
    %207 = vdwg.mxu0
    %v208 = vld [vmem:[%s3] sm:$0xff]
    %v209 = vld [vmem:[%s3 + $0x8] sm:$0xff]
    %v210 = vld [vmem:[%s3 + $0x10] sm:$0xff]
    %v211 = vld [vmem:[%s3 + $0x18] sm:$0xff]
    %v212 = vld [vmem:[%s3 + $0x20] sm:$0xff]
    %v213 = vld [vmem:[%s3 + $0x28] sm:$0xff]
    %v214 = vld [vmem:[%s3 + $0x30] sm:$0xff]
    %v215 = vld [vmem:[%s3 + $0x38] sm:$0xff]
    %v216 = vld [vmem:[%s4] sm:$0xff]
    %v217 = vld [vmem:[%s4 + $0x8] sm:$0xff]
    %v218 = vld [vmem:[%s4 + $0x10] sm:$0xff]
    %v219 = vld [vmem:[%s4 + $0x18] sm:$0xff]
    %v220 = vld [vmem:[%s4 + $0x20] sm:$0xff]
    %v221 = vld [vmem:[%s4 + $0x28] sm:$0xff]
    %v222 = vld [vmem:[%s4 + $0x30] sm:$0xff]
    %v223 = vld [vmem:[%s4 + $0x38] sm:$0xff]
    %v224 = vld [vmem:[%s4 + $0x40] sm:$0xff]
    %v225 = vld [vmem:[%s4 + $0x48] sm:$0xff]
    %v226 = vld [vmem:[%s4 + $0x50] sm:$0xff]
    %v227 = vld [vmem:[%s4 + $0x58] sm:$0xff]
    %v228 = vld [vmem:[%s4 + $0x60] sm:$0xff]
    %v229 = vld [vmem:[%s4 + $0x68] sm:$0xff]
    %v230 = vld [vmem:[%s4 + $0x70] sm:$0xff]
    %v231 = vld [vmem:[%s4 + $0x78] sm:$0xff]
    %v232 = vld [vmem:[%s5] sm:$0x3]
    %v234 = vlaneseq
    %v235 = vshrl.u32 %v234, 7
    %v236 = vsub.s32 0, %v235
    %v237 = vrot.slane %v232, %v236
    %v238 = vlaneseq
    %v239 = vshrl.u32 %v238, 7
    %v240 = vsub.s32 1, %v239
    %v241 = vrot.slane %v232, %v240
    %vm244 = vcmask 261120
    %v246 = vsel %vm244, %v205, 0
    %248 = vmatprep.subr.mxu0 %v209
    %249 = vmatpush1.msra.mxu0 %v208
    %250 = vmatprep.subr.mxu0 %v211
    %251 = vmatpush1.msra.mxu0 %v210
    %252 = vmatprep.subr.mxu0 %v213
    %253 = vmatpush1.msra.mxu0 %v212
    %254 = vmatprep.subr.mxu0 %v215
    %255 = vmatpush1.msra.mxu0 %v214
    %256 = vmatprep.subr.mxu0 0.0
    %257 = vmatpush1.msra.mxu0 0.0
    %258 = vmatprep.subr.mxu0 0.0
    %259 = vmatpush1.msra.mxu0 0.0
    %260 = vmatprep.subr.mxu0 0.0
    %261 = vmatpush1.msra.mxu0 0.0
    %262 = vmatprep.subr.mxu0 0.0
    %263 = vmatpush1.msra.mxu0 0.0
    %264 = vmatprep.subr.mxu0 0.0
    %265 = vmatpush1.msra.mxu0 0.0
    %266 = vmatprep.subr.mxu0 0.0
    %267 = vmatpush1.msra.mxu0 0.0
    %268 = vmatprep.subr.mxu0 0.0
    %269 = vmatpush1.msra.mxu0 0.0
    %270 = vmatprep.subr.mxu0 0.0
    %271 = vmatpush1.msra.mxu0 0.0
    %272 = vmatprep.subr.mxu0 0.0
    %273 = vmatpush1.msra.mxu0 0.0
    %274 = vmatprep.subr.mxu0 0.0
    %275 = vmatpush1.msra.mxu0 0.0
    %276 = vmatprep.subr.mxu0 0.0
    %277 = vmatpush1.msra.mxu0 0.0
    %278 = vmatprep.subr.mxu0 0.0
    %279 = vmatpush1.msra.mxu0 0.0
    %280 = vmatprep.subr.mxu0 0.0
    %281 = vmatpush1.msra.mxu0 0.0
    %282 = vmatprep.subr.mxu0 0.0
    %283 = vmatpush1.msra.mxu0 0.0
    %284 = vmatprep.subr.mxu0 0.0
    %285 = vmatpush1.msra.mxu0 0.0
    %286 = vmatprep.subr.mxu0 0.0
    %287 = vmatpush1.msra.mxu0 0.0
    %288 = vmatprep.subr.mxu0 0.0
    %289 = vmatpush1.msra.mxu0 0.0
    %290 = vmatprep.subr.mxu0 0.0
    %291 = vmatpush1.msra.mxu0 0.0
    %292 = vmatprep.subr.mxu0 0.0
    %293 = vmatpush1.msra.mxu0 0.0
    %294 = vmatprep.subr.mxu0 0.0
    %295 = vmatpush1.msra.mxu0 0.0
    %296 = vmatprep.subr.mxu0 0.0
    %297 = vmatpush1.msra.mxu0 0.0
    %298 = vmatprep.subr.mxu0 0.0
    %299 = vmatpush1.msra.mxu0 0.0
    %300 = vmatprep.subr.mxu0 0.0
    %301 = vmatpush1.msra.mxu0 0.0
    %302 = vmatprep.subr.mxu0 0.0
    %303 = vmatpush1.msra.mxu0 0.0
    %304 = vmatprep.subr.mxu0 0.0
    %305 = vmatpush1.msra.mxu0 0.0
    %306 = vmatprep.subr.mxu0 0.0
    %307 = vmatpush1.msra.mxu0 0.0
    %308 = vmatprep.subr.mxu0 0.0
    %309 = vmatpush1.msra.mxu0 0.0
    %310 = vmatprep.subr.mxu0 0.0
    %311 = vmatpush1.msra.mxu0 0.0
    %312 = vmatprep.mubr.f32.mxu0 0.0
    %313 = vmatmul.mubr.f32.gmra.mrb[0].mxu0 %v246
    %v314 = vpop.f32.mrb[0].mxu0
    %v315 = vadd.f32 %v237, %v314
    %v316 = vpop.f32.mrb[0].mxu0
    %v317 = vadd.f32 %v241, %v316
    %318 = vdwg.mxu0
    %vm319 = vcmask 523264
    %v321 = vsel %vm319, 1.0, 0
    %323 = vmatprep.subr.mxu0 %v217
    %324 = vmatpush1.msra.mxu0 %v216
    %325 = vmatprep.subr.mxu0 %v219
    %326 = vmatpush1.msra.mxu0 %v218
    %327 = vmatprep.subr.mxu0 %v221
    %328 = vmatpush1.msra.mxu0 %v220
    %329 = vmatprep.subr.mxu0 %v223
    %330 = vmatpush1.msra.mxu0 %v222
    %331 = vmatprep.subr.mxu0 %v225
    %332 = vmatpush1.msra.mxu0 %v224
    %333 = vmatprep.subr.mxu0 %v227
    %334 = vmatpush1.msra.mxu0 %v226
    %335 = vmatprep.subr.mxu0 %v229
    %336 = vmatpush1.msra.mxu0 %v228
    %337 = vmatprep.subr.mxu0 %v231
    %338 = vmatpush1.msra.mxu0 %v230
    %339 = vmatprep.subr.mxu0 0.0
    %340 = vmatpush1.msra.mxu0 0.0
    %341 = vmatprep.subr.mxu0 0.0
    %342 = vmatpush1.msra.mxu0 0.0
    %343 = vmatprep.subr.mxu0 0.0
    %344 = vmatpush1.msra.mxu0 0.0
    %345 = vmatprep.subr.mxu0 0.0
    %346 = vmatpush1.msra.mxu0 0.0
    %347 = vmatprep.subr.mxu0 0.0
    %348 = vmatpush1.msra.mxu0 0.0
    %349 = vmatprep.subr.mxu0 0.0
    %350 = vmatpush1.msra.mxu0 0.0
    %351 = vmatprep.subr.mxu0 0.0
    %352 = vmatpush1.msra.mxu0 0.0
    %353 = vmatprep.subr.mxu0 0.0
    %354 = vmatpush1.msra.mxu0 0.0
    %355 = vmatprep.subr.mxu0 0.0
    %356 = vmatpush1.msra.mxu0 0.0
    %357 = vmatprep.subr.mxu0 0.0
    %358 = vmatpush1.msra.mxu0 0.0
    %359 = vmatprep.subr.mxu0 0.0
    %360 = vmatpush1.msra.mxu0 0.0
    %361 = vmatprep.subr.mxu0 0.0
    %362 = vmatpush1.msra.mxu0 0.0
    %363 = vmatprep.subr.mxu0 0.0
    %364 = vmatpush1.msra.mxu0 0.0
    %365 = vmatprep.subr.mxu0 0.0
    %366 = vmatpush1.msra.mxu0 0.0
    %367 = vmatprep.subr.mxu0 0.0
    %368 = vmatpush1.msra.mxu0 0.0
    %369 = vmatprep.subr.mxu0 0.0
    %370 = vmatpush1.msra.mxu0 0.0
    %371 = vmatprep.subr.mxu0 0.0
    %372 = vmatpush1.msra.mxu0 0.0
    %373 = vmatprep.subr.mxu0 0.0
    %374 = vmatpush1.msra.mxu0 0.0
    %375 = vmatprep.subr.mxu0 0.0
    %376 = vmatpush1.msra.mxu0 0.0
    %377 = vmatprep.subr.mxu0 0.0
    %378 = vmatpush1.msra.mxu0 0.0
    %379 = vmatprep.subr.mxu0 0.0
    %380 = vmatpush1.msra.mxu0 0.0
    %381 = vmatprep.subr.mxu0 0.0
    %382 = vmatpush1.msra.mxu0 0.0
    %383 = vmatprep.subr.mxu0 0.0
    %384 = vmatpush1.msra.mxu0 0.0
    %385 = vmatprep.subr.mxu0 0.0
    %386 = vmatpush1.msra.mxu0 0.0
    %387 = vmatprep.mubr.f32.mxu0 0.0
    %388 = vmatmul.mubr.f32.gmra.mrb[0].mxu0 %v321
    %v389 = vpop.f32.mrb[0].mxu0
    %v390 = vadd.f32 0.0, %v389
    %v391 = vpop.f32.mrb[0].mxu0
    %v392 = vadd.f32 0.0, %v391
    %393 = vdwg.mxu0
    %v394 = vadd.f32 %v315, %v390
    %v395 = vadd.f32 %v317, %v392
    %v396 = vxor.u32 %v394, 2147483648
    %v397 = vxor.u32 %v395, 2147483648
    %v398 = vmul.f32 %v396, 1.442695
    %v399 = vpow.pop %v398
    %v400 = vmul.f32 %v397, 1.442695
    %v401 = vpow.pop %v400
    %v402 = vadd.f32 %v399, 1.0
    %v403 = vadd.f32 %v401, 1.0
    %v404 = vrcp.pop %v402
    %v405 = vmul.f32 1.0, %v404
    %v406 = vrcp.pop %v403
    %v407 = vmul.f32 1.0, %v406
    %v408 = vtanh.pop %v395
    %410 = vrot.lane.b32.xlu0 %v408, 64
    %v411 = vpop.permute.xlu0 %410
    %v413 = vmul.f32 %v405, %v411
    %415 = vrot.lane.b32.xlu0 %v413, 64
    %v416 = vpop.permute.xlu0 %415
    %v418 = vadd.f32 %v405, %v416
    %v419 = vtanh.pop %v418
    %421 = vrot.lane.b32.xlu0 %v419, 64
    %v422 = vpop.permute.xlu0 %421
    %v424 = vmul.f32 %v407, %v422
    %vm425 = vcmask 516096
    %426 = vst.msk [vmem:[#allocation2] sm:$0x1] %vm425, %v424
    %v428 = vsel %vm319, %v424, 0
    %430 = vmatprep.subr.mxu0 %v217
    %431 = vmatpush1.msra.mxu0 %v216
    %432 = vmatprep.subr.mxu0 %v219
    %433 = vmatpush1.msra.mxu0 %v218
    %434 = vmatprep.subr.mxu0 %v221
    %435 = vmatpush1.msra.mxu0 %v220
    %436 = vmatprep.subr.mxu0 %v223
    %437 = vmatpush1.msra.mxu0 %v222
    %438 = vmatprep.subr.mxu0 %v225
    %439 = vmatpush1.msra.mxu0 %v224
    %440 = vmatprep.subr.mxu0 %v227
    %441 = vmatpush1.msra.mxu0 %v226
    %442 = vmatprep.subr.mxu0 %v229
    %443 = vmatpush1.msra.mxu0 %v228
    %444 = vmatprep.subr.mxu0 %v231
    %445 = vmatpush1.msra.mxu0 %v230
    %446 = vmatprep.subr.mxu0 0.0
    %447 = vmatpush1.msra.mxu0 0.0
    %448 = vmatprep.subr.mxu0 0.0
    %449 = vmatpush1.msra.mxu0 0.0
    %450 = vmatprep.subr.mxu0 0.0
    %451 = vmatpush1.msra.mxu0 0.0
    %452 = vmatprep.subr.mxu0 0.0
    %453 = vmatpush1.msra.mxu0 0.0
    %454 = vmatprep.subr.mxu0 0.0
    %455 = vmatpush1.msra.mxu0 0.0
    %456 = vmatprep.subr.mxu0 0.0
    %457 = vmatpush1.msra.mxu0 0.0
    %458 = vmatprep.subr.mxu0 0.0
    %459 = vmatpush1.msra.mxu0 0.0
    %460 = vmatprep.subr.mxu0 0.0
    %461 = vmatpush1.msra.mxu0 0.0
    %462 = vmatprep.subr.mxu0 0.0
    %463 = vmatpush1.msra.mxu0 0.0
    %464 = vmatprep.subr.mxu0 0.0
    %465 = vmatpush1.msra.mxu0 0.0
    %466 = vmatprep.subr.mxu0 0.0
    %467 = vmatpush1.msra.mxu0 0.0
    %468 = vmatprep.subr.mxu0 0.0
    %469 = vmatpush1.msra.mxu0 0.0
    %470 = vmatprep.subr.mxu0 0.0
    %471 = vmatpush1.msra.mxu0 0.0
    %472 = vmatprep.subr.mxu0 0.0
    %473 = vmatpush1.msra.mxu0 0.0
    %474 = vmatprep.subr.mxu0 0.0
    %475 = vmatpush1.msra.mxu0 0.0
    %476 = vmatprep.subr.mxu0 0.0
    %477 = vmatpush1.msra.mxu0 0.0
    %478 = vmatprep.subr.mxu0 0.0
    %479 = vmatpush1.msra.mxu0 0.0
    %480 = vmatprep.subr.mxu0 0.0
    %481 = vmatpush1.msra.mxu0 0.0
    %482 = vmatprep.subr.mxu0 0.0
    %483 = vmatpush1.msra.mxu0 0.0
    %484 = vmatprep.subr.mxu0 0.0
    %485 = vmatpush1.msra.mxu0 0.0
    %486 = vmatprep.subr.mxu0 0.0
    %487 = vmatpush1.msra.mxu0 0.0
    %488 = vmatprep.subr.mxu0 0.0
    %489 = vmatpush1.msra.mxu0 0.0
    %490 = vmatprep.subr.mxu0 0.0
    %491 = vmatpush1.msra.mxu0 0.0
    %492 = vmatprep.subr.mxu0 0.0
    %493 = vmatpush1.msra.mxu0 0.0
    %494 = vmatprep.mubr.f32.mxu0 0.0
    %495 = vmatmul.mubr.f32.gmra.mrb[0].mxu0 %v428
    %v496 = vpop.f32.mrb[0].mxu0
    %v497 = vadd.f32 0.0, %v496
    %v498 = vpop.f32.mrb[0].mxu0
    %v499 = vadd.f32 0.0, %v498
    %500 = vdwg.mxu0
    %v503 = vrot.slane %v497, 7
    %v504 = vrot.slane %v499, 7
    %v507 = vadd.f32 %v315, %v503
    %v508 = vadd.f32 %v317, %v504
    %v509 = vxor.u32 %v507, 2147483648
    %v510 = vxor.u32 %v508, 2147483648
    %v511 = vmul.f32 %v509, 1.442695
    %v512 = vpow.pop %v511
    %v513 = vmul.f32 %v510, 1.442695
    %v514 = vpow.pop %v513
    %v515 = vadd.f32 %v512, 1.0
    %v516 = vadd.f32 %v514, 1.0
    %v517 = vrcp.pop %v515
    %v518 = vmul.f32 1.0, %v517
    %v519 = vrcp.pop %v516
    %v520 = vmul.f32 1.0, %v519
    %v521 = vtanh.pop %v508
    %v523 = vrot.slane %v418, 7
    %v525 = vmul.f32 %v518, %v523
    %527 = vrot.lane.b32.xlu0 %v521, 64
    %v528 = vpop.permute.xlu0 %527
    %v530 = vmul.f32 %v518, %v528
    %532 = vrot.lane.b32.xlu0 %v530, 64
    %v533 = vpop.permute.xlu0 %532
    %v535 = vadd.f32 %v525, %v533
    %v536 = vtanh.pop %v535
    %538 = vrot.lane.b32.xlu0 %v536, 64
    %v539 = vpop.permute.xlu0 %538
    %v541 = vmul.f32 %v520, %v539
    %vm542 = vcmask 517121
    %543 = vst.msk [vmem:[#allocation2] sm:$0x2] %vm542, %v541
    %v545 = vrot.slane %v541, 1
    %v546 = vsel %vm319, %v545, 0
    %548 = vmatprep.subr.mxu0 %v217
    %549 = vmatpush1.msra.mxu0 %v216
    %550 = vmatprep.subr.mxu0 %v219
    %551 = vmatpush1.msra.mxu0 %v218
    %552 = vmatprep.subr.mxu0 %v221
    %553 = vmatpush1.msra.mxu0 %v220
    %554 = vmatprep.subr.mxu0 %v223
    %555 = vmatpush1.msra.mxu0 %v222
    %556 = vmatprep.subr.mxu0 %v225
    %557 = vmatpush1.msra.mxu0 %v224
    %558 = vmatprep.subr.mxu0 %v227
    %559 = vmatpush1.msra.mxu0 %v226
    %560 = vmatprep.subr.mxu0 %v229
    %561 = vmatpush1.msra.mxu0 %v228
    %562 = vmatprep.subr.mxu0 %v231
    %563 = vmatpush1.msra.mxu0 %v230
    %564 = vmatprep.subr.mxu0 0.0
    %565 = vmatpush1.msra.mxu0 0.0
    %566 = vmatprep.subr.mxu0 0.0
    %567 = vmatpush1.msra.mxu0 0.0
    %568 = vmatprep.subr.mxu0 0.0
    %569 = vmatpush1.msra.mxu0 0.0
    %570 = vmatprep.subr.mxu0 0.0
    %571 = vmatpush1.msra.mxu0 0.0
    %572 = vmatprep.subr.mxu0 0.0
    %573 = vmatpush1.msra.mxu0 0.0
    %574 = vmatprep.subr.mxu0 0.0
    %575 = vmatpush1.msra.mxu0 0.0
    %576 = vmatprep.subr.mxu0 0.0
    %577 = vmatpush1.msra.mxu0 0.0
    %578 = vmatprep.subr.mxu0 0.0
    %579 = vmatpush1.msra.mxu0 0.0
    %580 = vmatprep.subr.mxu0 0.0
    %581 = vmatpush1.msra.mxu0 0.0
    %582 = vmatprep.subr.mxu0 0.0
    %583 = vmatpush1.msra.mxu0 0.0
    %584 = vmatprep.subr.mxu0 0.0
    %585 = vmatpush1.msra.mxu0 0.0
    %586 = vmatprep.subr.mxu0 0.0
    %587 = vmatpush1.msra.mxu0 0.0
    %588 = vmatprep.subr.mxu0 0.0
    %589 = vmatpush1.msra.mxu0 0.0
    %590 = vmatprep.subr.mxu0 0.0
    %591 = vmatpush1.msra.mxu0 0.0
    %592 = vmatprep.subr.mxu0 0.0
    %593 = vmatpush1.msra.mxu0 0.0
    %594 = vmatprep.subr.mxu0 0.0
    %595 = vmatpush1.msra.mxu0 0.0
    %596 = vmatprep.subr.mxu0 0.0
    %597 = vmatpush1.msra.mxu0 0.0
    %598 = vmatprep.subr.mxu0 0.0
    %599 = vmatpush1.msra.mxu0 0.0
    %600 = vmatprep.subr.mxu0 0.0
    %601 = vmatpush1.msra.mxu0 0.0
    %602 = vmatprep.subr.mxu0 0.0
    %603 = vmatpush1.msra.mxu0 0.0
    %604 = vmatprep.subr.mxu0 0.0
    %605 = vmatpush1.msra.mxu0 0.0
    %606 = vmatprep.subr.mxu0 0.0
    %607 = vmatpush1.msra.mxu0 0.0
    %608 = vmatprep.subr.mxu0 0.0
    %609 = vmatpush1.msra.mxu0 0.0
    %610 = vmatprep.subr.mxu0 0.0
    %611 = vmatpush1.msra.mxu0 0.0
    %612 = vmatprep.mubr.f32.mxu0 0.0
    %613 = vmatmul.mubr.f32.gmra.mrb[0].mxu0 %v546
    %v614 = vpop.f32.mrb[0].mxu0
    %v615 = vadd.f32 0.0, %v614
    %v616 = vpop.f32.mrb[0].mxu0
    %v617 = vadd.f32 0.0, %v616
    %618 = vdwg.mxu0
    %v621 = vrot.slane %v615, 6
    %v622 = vrot.slane %v617, 6
    %v625 = vadd.f32 %v315, %v621
    %v626 = vadd.f32 %v317, %v622
    %v627 = vxor.u32 %v625, 2147483648
    %v628 = vxor.u32 %v626, 2147483648
    %v629 = vmul.f32 %v627, 1.442695
    %v630 = vpow.pop %v629
    %v631 = vmul.f32 %v628, 1.442695
    %v632 = vpow.pop %v631
    %v633 = vadd.f32 %v630, 1.0
    %v634 = vadd.f32 %v632, 1.0
    %v635 = vrcp.pop %v633
    %v636 = vmul.f32 1.0, %v635
    %v637 = vrcp.pop %v634
    %v638 = vmul.f32 1.0, %v637
    %v639 = vtanh.pop %v626
    %v641 = vrot.slane %v535, 7
    %v643 = vmul.f32 %v636, %v641
    %645 = vrot.lane.b32.xlu0 %v639, 64
    %v646 = vpop.permute.xlu0 %645
    %v648 = vmul.f32 %v636, %v646
    %650 = vrot.lane.b32.xlu0 %v648, 64
    %v651 = vpop.permute.xlu0 %650
    %v653 = vadd.f32 %v643, %v651
    %v654 = vtanh.pop %v653
    %656 = vrot.lane.b32.xlu0 %v654, 64
    %v657 = vpop.permute.xlu0 %656
    %v659 = vmul.f32 %v638, %v657
    %vm660 = vcmask 518146
    %661 = vst.msk [vmem:[#allocation2] sm:$0x4] %vm660, %v659
    %v663 = vrot.slane %v659, 2
    %v664 = vsel %vm319, %v663, 0
    %666 = vmatprep.subr.mxu0 %v217
    %667 = vmatpush1.msra.mxu0 %v216
    %668 = vmatprep.subr.mxu0 %v219
    %669 = vmatpush1.msra.mxu0 %v218
    %670 = vmatprep.subr.mxu0 %v221
    %671 = vmatpush1.msra.mxu0 %v220
    %672 = vmatprep.subr.mxu0 %v223
    %673 = vmatpush1.msra.mxu0 %v222
    %674 = vmatprep.subr.mxu0 %v225
    %675 = vmatpush1.msra.mxu0 %v224
    %676 = vmatprep.subr.mxu0 %v227
    %677 = vmatpush1.msra.mxu0 %v226
    %678 = vmatprep.subr.mxu0 %v229
    %679 = vmatpush1.msra.mxu0 %v228
    %680 = vmatprep.subr.mxu0 %v231
    %681 = vmatpush1.msra.mxu0 %v230
    %682 = vmatprep.subr.mxu0 0.0
    %683 = vmatpush1.msra.mxu0 0.0
    %684 = vmatprep.subr.mxu0 0.0
    %685 = vmatpush1.msra.mxu0 0.0
    %686 = vmatprep.subr.mxu0 0.0
    %687 = vmatpush1.msra.mxu0 0.0
    %688 = vmatprep.subr.mxu0 0.0
    %689 = vmatpush1.msra.mxu0 0.0
    %690 = vmatprep.subr.mxu0 0.0
    %691 = vmatpush1.msra.mxu0 0.0
    %692 = vmatprep.subr.mxu0 0.0
    %693 = vmatpush1.msra.mxu0 0.0
    %694 = vmatprep.subr.mxu0 0.0
    %695 = vmatpush1.msra.mxu0 0.0
    %696 = vmatprep.subr.mxu0 0.0
    %697 = vmatpush1.msra.mxu0 0.0
    %698 = vmatprep.subr.mxu0 0.0
    %699 = vmatpush1.msra.mxu0 0.0
    %700 = vmatprep.subr.mxu0 0.0
    %701 = vmatpush1.msra.mxu0 0.0
    %702 = vmatprep.subr.mxu0 0.0
    %703 = vmatpush1.msra.mxu0 0.0
    %704 = vmatprep.subr.mxu0 0.0
    %705 = vmatpush1.msra.mxu0 0.0
    %706 = vmatprep.subr.mxu0 0.0
    %707 = vmatpush1.msra.mxu0 0.0
    %708 = vmatprep.subr.mxu0 0.0
    %709 = vmatpush1.msra.mxu0 0.0
    %710 = vmatprep.subr.mxu0 0.0
    %711 = vmatpush1.msra.mxu0 0.0
    %712 = vmatprep.subr.mxu0 0.0
    %713 = vmatpush1.msra.mxu0 0.0
    %714 = vmatprep.subr.mxu0 0.0
    %715 = vmatpush1.msra.mxu0 0.0
    %716 = vmatprep.subr.mxu0 0.0
    %717 = vmatpush1.msra.mxu0 0.0
    %718 = vmatprep.subr.mxu0 0.0
    %719 = vmatpush1.msra.mxu0 0.0
    %720 = vmatprep.subr.mxu0 0.0
    %721 = vmatpush1.msra.mxu0 0.0
    %722 = vmatprep.subr.mxu0 0.0
    %723 = vmatpush1.msra.mxu0 0.0
    %724 = vmatprep.subr.mxu0 0.0
    %725 = vmatpush1.msra.mxu0 0.0
    %726 = vmatprep.subr.mxu0 0.0
    %727 = vmatpush1.msra.mxu0 0.0
    %728 = vmatprep.subr.mxu0 0.0
    %729 = vmatpush1.msra.mxu0 0.0
    %730 = vmatprep.mubr.f32.mxu0 0.0
    %731 = vmatmul.mubr.f32.gmra.mrb[0].mxu0 %v664
    %v732 = vpop.f32.mrb[0].mxu0
    %v733 = vadd.f32 0.0, %v732
    %v734 = vpop.f32.mrb[0].mxu0
    %v735 = vadd.f32 0.0, %v734
    %736 = vdwg.mxu0
    %v739 = vrot.slane %v733, 5
    %v740 = vrot.slane %v735, 5
    %v743 = vadd.f32 %v315, %v739
    %v744 = vadd.f32 %v317, %v740
    %v745 = vxor.u32 %v743, 2147483648
    %v746 = vxor.u32 %v744, 2147483648
    %v747 = vmul.f32 %v745, 1.442695
    %v748 = vpow.pop %v747
    %v749 = vmul.f32 %v746, 1.442695
    %v750 = vpow.pop %v749
    %v751 = vadd.f32 %v748, 1.0
    %v752 = vadd.f32 %v750, 1.0
    %v753 = vrcp.pop %v751
    %v754 = vmul.f32 1.0, %v753
    %v755 = vrcp.pop %v752
    %v756 = vmul.f32 1.0, %v755
    %v757 = vtanh.pop %v744
    %v759 = vrot.slane %v653, 7
    %v761 = vmul.f32 %v754, %v759
    %763 = vrot.lane.b32.xlu0 %v757, 64
    %v764 = vpop.permute.xlu0 %763
    %v766 = vmul.f32 %v754, %v764
    %768 = vrot.lane.b32.xlu0 %v766, 64
    %v769 = vpop.permute.xlu0 %768
    %v771 = vadd.f32 %v761, %v769
    %v772 = vtanh.pop %v771
    %774 = vrot.lane.b32.xlu0 %v772, 64
    %v775 = vpop.permute.xlu0 %774
    %v777 = vmul.f32 %v756, %v775
    %vm778 = vcmask 519171
    %779 = vst.msk [vmem:[#allocation2] sm:$0x8] %vm778, %v777
    %v781 = vrot.slane %v777, 3
    %v782 = vsel %vm319, %v781, 0
    %784 = vmatprep.subr.mxu0 %v217
    %785 = vmatpush1.msra.mxu0 %v216
    %786 = vmatprep.subr.mxu0 %v219
    %787 = vmatpush1.msra.mxu0 %v218
    %788 = vmatprep.subr.mxu0 %v221
    %789 = vmatpush1.msra.mxu0 %v220
    %790 = vmatprep.subr.mxu0 %v223
    %791 = vmatpush1.msra.mxu0 %v222
    %792 = vmatprep.subr.mxu0 %v225
    %793 = vmatpush1.msra.mxu0 %v224
    %794 = vmatprep.subr.mxu0 %v227
    %795 = vmatpush1.msra.mxu0 %v226
    %796 = vmatprep.subr.mxu0 %v229
    %797 = vmatpush1.msra.mxu0 %v228
    %798 = vmatprep.subr.mxu0 %v231
    %799 = vmatpush1.msra.mxu0 %v230
    %800 = vmatprep.subr.mxu0 0.0
    %801 = vmatpush1.msra.mxu0 0.0
    %802 = vmatprep.subr.mxu0 0.0
    %803 = vmatpush1.msra.mxu0 0.0
    %804 = vmatprep.subr.mxu0 0.0
    %805 = vmatpush1.msra.mxu0 0.0
    %806 = vmatprep.subr.mxu0 0.0
    %807 = vmatpush1.msra.mxu0 0.0
    %808 = vmatprep.subr.mxu0 0.0
    %809 = vmatpush1.msra.mxu0 0.0
    %810 = vmatprep.subr.mxu0 0.0
    %811 = vmatpush1.msra.mxu0 0.0
    %812 = vmatprep.subr.mxu0 0.0
    %813 = vmatpush1.msra.mxu0 0.0
    %814 = vmatprep.subr.mxu0 0.0
    %815 = vmatpush1.msra.mxu0 0.0
    %816 = vmatprep.subr.mxu0 0.0
    %817 = vmatpush1.msra.mxu0 0.0
    %818 = vmatprep.subr.mxu0 0.0
    %819 = vmatpush1.msra.mxu0 0.0
    %820 = vmatprep.subr.mxu0 0.0
    %821 = vmatpush1.msra.mxu0 0.0
    %822 = vmatprep.subr.mxu0 0.0
    %823 = vmatpush1.msra.mxu0 0.0
    %824 = vmatprep.subr.mxu0 0.0
    %825 = vmatpush1.msra.mxu0 0.0
    %826 = vmatprep.subr.mxu0 0.0
    %827 = vmatpush1.msra.mxu0 0.0
    %828 = vmatprep.subr.mxu0 0.0
    %829 = vmatpush1.msra.mxu0 0.0
    %830 = vmatprep.subr.mxu0 0.0
    %831 = vmatpush1.msra.mxu0 0.0
    %832 = vmatprep.subr.mxu0 0.0
    %833 = vmatpush1.msra.mxu0 0.0
    %834 = vmatprep.subr.mxu0 0.0
    %835 = vmatpush1.msra.mxu0 0.0
    %836 = vmatprep.subr.mxu0 0.0
    %837 = vmatpush1.msra.mxu0 0.0
    %838 = vmatprep.subr.mxu0 0.0
    %839 = vmatpush1.msra.mxu0 0.0
    %840 = vmatprep.subr.mxu0 0.0
    %841 = vmatpush1.msra.mxu0 0.0
    %842 = vmatprep.subr.mxu0 0.0
    %843 = vmatpush1.msra.mxu0 0.0
    %844 = vmatprep.subr.mxu0 0.0
    %845 = vmatpush1.msra.mxu0 0.0
    %846 = vmatprep.subr.mxu0 0.0
    %847 = vmatpush1.msra.mxu0 0.0
    %848 = vmatprep.mubr.f32.mxu0 0.0
    %849 = vmatmul.mubr.f32.gmra.mrb[0].mxu0 %v782
    %v850 = vpop.f32.mrb[0].mxu0
    %v851 = vadd.f32 0.0, %v850
    %v852 = vpop.f32.mrb[0].mxu0
    %v853 = vadd.f32 0.0, %v852
    %854 = vdwg.mxu0
    %v857 = vrot.slane %v851, 4
    %v858 = vrot.slane %v853, 4
    %v861 = vadd.f32 %v315, %v857
    %v862 = vadd.f32 %v317, %v858
    %v863 = vxor.u32 %v861, 2147483648
    %v864 = vxor.u32 %v862, 2147483648
    %v865 = vmul.f32 %v863, 1.442695
    %v866 = vpow.pop %v865
    %v867 = vmul.f32 %v864, 1.442695
    %v868 = vpow.pop %v867
    %v869 = vadd.f32 %v866, 1.0
    %v870 = vadd.f32 %v868, 1.0
    %v871 = vrcp.pop %v869
    %v872 = vmul.f32 1.0, %v871
    %v873 = vrcp.pop %v870
    %v874 = vmul.f32 1.0, %v873
    %v875 = vtanh.pop %v862
    %v877 = vrot.slane %v771, 7
    %v879 = vmul.f32 %v872, %v877
    %881 = vrot.lane.b32.xlu0 %v875, 64
    %v882 = vpop.permute.xlu0 %881
    %v884 = vmul.f32 %v872, %v882
    %886 = vrot.lane.b32.xlu0 %v884, 64
    %v887 = vpop.permute.xlu0 %886
    %v889 = vadd.f32 %v879, %v887
    %v890 = vtanh.pop %v889
    %892 = vrot.lane.b32.xlu0 %v890, 64
    %v893 = vpop.permute.xlu0 %892
    %v895 = vmul.f32 %v874, %v893
    %vm896 = vcmask 520196
    %897 = vst.msk [vmem:[#allocation2] sm:$0x10] %vm896, %v895
    %v899 = vrot.slane %v895, 4
    %v900 = vsel %vm319, %v899, 0
    %902 = vmatprep.subr.mxu0 %v217
    %903 = vmatpush1.msra.mxu0 %v216
    %904 = vmatprep.subr.mxu0 %v219
    %905 = vmatpush1.msra.mxu0 %v218
    %906 = vmatprep.subr.mxu0 %v221
    %907 = vmatpush1.msra.mxu0 %v220
    %908 = vmatprep.subr.mxu0 %v223
    %909 = vmatpush1.msra.mxu0 %v222
    %910 = vmatprep.subr.mxu0 %v225
    %911 = vmatpush1.msra.mxu0 %v224
    %912 = vmatprep.subr.mxu0 %v227
    %913 = vmatpush1.msra.mxu0 %v226
    %914 = vmatprep.subr.mxu0 %v229
    %915 = vmatpush1.msra.mxu0 %v228
    %916 = vmatprep.subr.mxu0 %v231
    %917 = vmatpush1.msra.mxu0 %v230
    %918 = vmatprep.subr.mxu0 0.0
    %919 = vmatpush1.msra.mxu0 0.0
    %920 = vmatprep.subr.mxu0 0.0
    %921 = vmatpush1.msra.mxu0 0.0
    %922 = vmatprep.subr.mxu0 0.0
    %923 = vmatpush1.msra.mxu0 0.0
    %924 = vmatprep.subr.mxu0 0.0
    %925 = vmatpush1.msra.mxu0 0.0
    %926 = vmatprep.subr.mxu0 0.0
    %927 = vmatpush1.msra.mxu0 0.0
    %928 = vmatprep.subr.mxu0 0.0
    %929 = vmatpush1.msra.mxu0 0.0
    %930 = vmatprep.subr.mxu0 0.0
    %931 = vmatpush1.msra.mxu0 0.0
    %932 = vmatprep.subr.mxu0 0.0
    %933 = vmatpush1.msra.mxu0 0.0
    %934 = vmatprep.subr.mxu0 0.0
    %935 = vmatpush1.msra.mxu0 0.0
    %936 = vmatprep.subr.mxu0 0.0
    %937 = vmatpush1.msra.mxu0 0.0
    %938 = vmatprep.subr.mxu0 0.0
    %939 = vmatpush1.msra.mxu0 0.0
    %940 = vmatprep.subr.mxu0 0.0
    %941 = vmatpush1.msra.mxu0 0.0
    %942 = vmatprep.subr.mxu0 0.0
    %943 = vmatpush1.msra.mxu0 0.0
    %944 = vmatprep.subr.mxu0 0.0
    %945 = vmatpush1.msra.mxu0 0.0
    %946 = vmatprep.subr.mxu0 0.0
    %947 = vmatpush1.msra.mxu0 0.0
    %948 = vmatprep.subr.mxu0 0.0
    %949 = vmatpush1.msra.mxu0 0.0
    %950 = vmatprep.subr.mxu0 0.0
    %951 = vmatpush1.msra.mxu0 0.0
    %952 = vmatprep.subr.mxu0 0.0
    %953 = vmatpush1.msra.mxu0 0.0
    %954 = vmatprep.subr.mxu0 0.0
    %955 = vmatpush1.msra.mxu0 0.0
    %956 = vmatprep.subr.mxu0 0.0
    %957 = vmatpush1.msra.mxu0 0.0
    %958 = vmatprep.subr.mxu0 0.0
    %959 = vmatpush1.msra.mxu0 0.0
    %960 = vmatprep.subr.mxu0 0.0
    %961 = vmatpush1.msra.mxu0 0.0
    %962 = vmatprep.subr.mxu0 0.0
    %963 = vmatpush1.msra.mxu0 0.0
    %964 = vmatprep.subr.mxu0 0.0
    %965 = vmatpush1.msra.mxu0 0.0
    %966 = vmatprep.mubr.f32.mxu0 0.0
    %967 = vmatmul.mubr.f32.gmra.mrb[0].mxu0 %v900
    %v968 = vpop.f32.mrb[0].mxu0
    %v969 = vadd.f32 0.0, %v968
    %v970 = vpop.f32.mrb[0].mxu0
    %v971 = vadd.f32 0.0, %v970
    %972 = vdwg.mxu0
    %v975 = vrot.slane %v969, 3
    %v976 = vrot.slane %v971, 3
    %v979 = vadd.f32 %v315, %v975
    %v980 = vadd.f32 %v317, %v976
    %v981 = vxor.u32 %v979, 2147483648
    %v982 = vxor.u32 %v980, 2147483648
    %v983 = vmul.f32 %v981, 1.442695
    %v984 = vpow.pop %v983
    %v985 = vmul.f32 %v982, 1.442695
    %v986 = vpow.pop %v985
    %v987 = vadd.f32 %v984, 1.0
    %v988 = vadd.f32 %v986, 1.0
    %v989 = vrcp.pop %v987
    %v990 = vmul.f32 1.0, %v989
    %v991 = vrcp.pop %v988
    %v992 = vmul.f32 1.0, %v991
    %v993 = vtanh.pop %v980
    %v995 = vrot.slane %v889, 7
    %v997 = vmul.f32 %v990, %v995
    %999 = vrot.lane.b32.xlu0 %v993, 64
    %v1000 = vpop.permute.xlu0 %999
    %v1002 = vmul.f32 %v990, %v1000
    %1004 = vrot.lane.b32.xlu0 %v1002, 64
    %v1005 = vpop.permute.xlu0 %1004
    %v1007 = vadd.f32 %v997, %v1005
    %v1008 = vtanh.pop %v1007
    %1010 = vrot.lane.b32.xlu0 %v1008, 64
    %v1011 = vpop.permute.xlu0 %1010
    %v1013 = vmul.f32 %v992, %v1011
    %vm1014 = vcmask 521221
    %1015 = vst.msk [vmem:[#allocation2] sm:$0x20] %vm1014, %v1013
    %v1017 = vrot.slane %v1013, 5
    %v1018 = vsel %vm319, %v1017, 0
    %1020 = vmatprep.subr.mxu0 %v217
    %1021 = vmatpush1.msra.mxu0 %v216
    %1022 = vmatprep.subr.mxu0 %v219
    %1023 = vmatpush1.msra.mxu0 %v218
    %1024 = vmatprep.subr.mxu0 %v221
    %1025 = vmatpush1.msra.mxu0 %v220
    %1026 = vmatprep.subr.mxu0 %v223
    %1027 = vmatpush1.msra.mxu0 %v222
    %1028 = vmatprep.subr.mxu0 %v225
    %1029 = vmatpush1.msra.mxu0 %v224
    %1030 = vmatprep.subr.mxu0 %v227
    %1031 = vmatpush1.msra.mxu0 %v226
    %1032 = vmatprep.subr.mxu0 %v229
    %1033 = vmatpush1.msra.mxu0 %v228
    %1034 = vmatprep.subr.mxu0 %v231
    %1035 = vmatpush1.msra.mxu0 %v230
    %1036 = vmatprep.subr.mxu0 0.0
    %1037 = vmatpush1.msra.mxu0 0.0
    %1038 = vmatprep.subr.mxu0 0.0
    %1039 = vmatpush1.msra.mxu0 0.0
    %1040 = vmatprep.subr.mxu0 0.0
    %1041 = vmatpush1.msra.mxu0 0.0
    %1042 = vmatprep.subr.mxu0 0.0
    %1043 = vmatpush1.msra.mxu0 0.0
    %1044 = vmatprep.subr.mxu0 0.0
    %1045 = vmatpush1.msra.mxu0 0.0
    %1046 = vmatprep.subr.mxu0 0.0
    %1047 = vmatpush1.msra.mxu0 0.0
    %1048 = vmatprep.subr.mxu0 0.0
    %1049 = vmatpush1.msra.mxu0 0.0
    %1050 = vmatprep.subr.mxu0 0.0
    %1051 = vmatpush1.msra.mxu0 0.0
    %1052 = vmatprep.subr.mxu0 0.0
    %1053 = vmatpush1.msra.mxu0 0.0
    %1054 = vmatprep.subr.mxu0 0.0
    %1055 = vmatpush1.msra.mxu0 0.0
    %1056 = vmatprep.subr.mxu0 0.0
    %1057 = vmatpush1.msra.mxu0 0.0
    %1058 = vmatprep.subr.mxu0 0.0
    %1059 = vmatpush1.msra.mxu0 0.0
    %1060 = vmatprep.subr.mxu0 0.0
    %1061 = vmatpush1.msra.mxu0 0.0
    %1062 = vmatprep.subr.mxu0 0.0
    %1063 = vmatpush1.msra.mxu0 0.0
    %1064 = vmatprep.subr.mxu0 0.0
    %1065 = vmatpush1.msra.mxu0 0.0
    %1066 = vmatprep.subr.mxu0 0.0
    %1067 = vmatpush1.msra.mxu0 0.0
    %1068 = vmatprep.subr.mxu0 0.0
    %1069 = vmatpush1.msra.mxu0 0.0
    %1070 = vmatprep.subr.mxu0 0.0
    %1071 = vmatpush1.msra.mxu0 0.0
    %1072 = vmatprep.subr.mxu0 0.0
    %1073 = vmatpush1.msra.mxu0 0.0
    %1074 = vmatprep.subr.mxu0 0.0
    %1075 = vmatpush1.msra.mxu0 0.0
    %1076 = vmatprep.subr.mxu0 0.0
    %1077 = vmatpush1.msra.mxu0 0.0
    %1078 = vmatprep.subr.mxu0 0.0
    %1079 = vmatpush1.msra.mxu0 0.0
    %1080 = vmatprep.subr.mxu0 0.0
    %1081 = vmatpush1.msra.mxu0 0.0
    %1082 = vmatprep.subr.mxu0 0.0
    %1083 = vmatpush1.msra.mxu0 0.0
    %1084 = vmatprep.mubr.f32.mxu0 0.0
    %1085 = vmatmul.mubr.f32.gmra.mrb[0].mxu0 %v1018
    %v1086 = vpop.f32.mrb[0].mxu0
    %v1087 = vadd.f32 0.0, %v1086
    %v1088 = vpop.f32.mrb[0].mxu0
    %v1089 = vadd.f32 0.0, %v1088
    %1090 = vdwg.mxu0
    %v1093 = vrot.slane %v1087, 2
    %v1094 = vrot.slane %v1089, 2
    %v1097 = vadd.f32 %v315, %v1093
    %v1098 = vadd.f32 %v317, %v1094
    %v1099 = vxor.u32 %v1097, 2147483648
    %v1100 = vxor.u32 %v1098, 2147483648
    %v1101 = vmul.f32 %v1099, 1.442695
    %v1102 = vpow.pop %v1101
    %v1103 = vmul.f32 %v1100, 1.442695
    %v1104 = vpow.pop %v1103
    %v1105 = vadd.f32 %v1102, 1.0
    %v1106 = vadd.f32 %v1104, 1.0
    %v1107 = vrcp.pop %v1105
    %v1108 = vmul.f32 1.0, %v1107
    %v1109 = vrcp.pop %v1106
    %v1110 = vmul.f32 1.0, %v1109
    %v1111 = vtanh.pop %v1098
    %v1113 = vrot.slane %v1007, 7
    %v1115 = vmul.f32 %v1108, %v1113
    %1117 = vrot.lane.b32.xlu0 %v1111, 64
    %v1118 = vpop.permute.xlu0 %1117
    %v1120 = vmul.f32 %v1108, %v1118
    %1122 = vrot.lane.b32.xlu0 %v1120, 64
    %v1123 = vpop.permute.xlu0 %1122
    %v1125 = vadd.f32 %v1115, %v1123
    %v1126 = vtanh.pop %v1125
    %1128 = vrot.lane.b32.xlu0 %v1126, 64
    %v1129 = vpop.permute.xlu0 %1128
    %v1131 = vmul.f32 %v1110, %v1129
    %vm1132 = vcmask 522246
    %1133 = vst.msk [vmem:[#allocation2] sm:$0x40] %vm1132, %v1131
    %v1135 = vrot.slane %v1131, 6
    %v1136 = vsel %vm319, %v1135, 0
    %1138 = vmatprep.subr.mxu0 %v217
    %1139 = vmatpush1.msra.mxu0 %v216
    %1140 = vmatprep.subr.mxu0 %v219
    %1141 = vmatpush1.msra.mxu0 %v218
    %1142 = vmatprep.subr.mxu0 %v221
    %1143 = vmatpush1.msra.mxu0 %v220
    %1144 = vmatprep.subr.mxu0 %v223
    %1145 = vmatpush1.msra.mxu0 %v222
    %1146 = vmatprep.subr.mxu0 %v225
    %1147 = vmatpush1.msra.mxu0 %v224
    %1148 = vmatprep.subr.mxu0 %v227
    %1149 = vmatpush1.msra.mxu0 %v226
    %1150 = vmatprep.subr.mxu0 %v229
    %1151 = vmatpush1.msra.mxu0 %v228
    %1152 = vmatprep.subr.mxu0 %v231
    %1153 = vmatpush1.msra.mxu0 %v230
    %1154 = vmatprep.subr.mxu0 0.0
    %1155 = vmatpush1.msra.mxu0 0.0
    %1156 = vmatprep.subr.mxu0 0.0
    %1157 = vmatpush1.msra.mxu0 0.0
    %1158 = vmatprep.subr.mxu0 0.0
    %1159 = vmatpush1.msra.mxu0 0.0
    %1160 = vmatprep.subr.mxu0 0.0
    %1161 = vmatpush1.msra.mxu0 0.0
    %1162 = vmatprep.subr.mxu0 0.0
    %1163 = vmatpush1.msra.mxu0 0.0
    %1164 = vmatprep.subr.mxu0 0.0
    %1165 = vmatpush1.msra.mxu0 0.0
    %1166 = vmatprep.subr.mxu0 0.0
    %1167 = vmatpush1.msra.mxu0 0.0
    %1168 = vmatprep.subr.mxu0 0.0
    %1169 = vmatpush1.msra.mxu0 0.0
    %1170 = vmatprep.subr.mxu0 0.0
    %1171 = vmatpush1.msra.mxu0 0.0
    %1172 = vmatprep.subr.mxu0 0.0
    %1173 = vmatpush1.msra.mxu0 0.0
    %1174 = vmatprep.subr.mxu0 0.0
    %1175 = vmatpush1.msra.mxu0 0.0
    %1176 = vmatprep.subr.mxu0 0.0
    %1177 = vmatpush1.msra.mxu0 0.0
    %1178 = vmatprep.subr.mxu0 0.0
    %1179 = vmatpush1.msra.mxu0 0.0
    %1180 = vmatprep.subr.mxu0 0.0
    %1181 = vmatpush1.msra.mxu0 0.0
    %1182 = vmatprep.subr.mxu0 0.0
    %1183 = vmatpush1.msra.mxu0 0.0
    %1184 = vmatprep.subr.mxu0 0.0
    %1185 = vmatpush1.msra.mxu0 0.0
    %1186 = vmatprep.subr.mxu0 0.0
    %1187 = vmatpush1.msra.mxu0 0.0
    %1188 = vmatprep.subr.mxu0 0.0
    %1189 = vmatpush1.msra.mxu0 0.0
    %1190 = vmatprep.subr.mxu0 0.0
    %1191 = vmatpush1.msra.mxu0 0.0
    %1192 = vmatprep.subr.mxu0 0.0
    %1193 = vmatpush1.msra.mxu0 0.0
    %1194 = vmatprep.subr.mxu0 0.0
    %1195 = vmatpush1.msra.mxu0 0.0
    %1196 = vmatprep.subr.mxu0 0.0
    %1197 = vmatpush1.msra.mxu0 0.0
    %1198 = vmatprep.subr.mxu0 0.0
    %1199 = vmatpush1.msra.mxu0 0.0
    %1200 = vmatprep.subr.mxu0 0.0
    %1201 = vmatpush1.msra.mxu0 0.0
    %1202 = vmatprep.mubr.f32.mxu0 0.0
    %1203 = vmatmul.mubr.f32.gmra.mrb[0].mxu0 %v1136
    %v1204 = vpop.f32.mrb[0].mxu0
    %v1205 = vadd.f32 0.0, %v1204
    %v1206 = vpop.f32.mrb[0].mxu0
    %v1207 = vadd.f32 0.0, %v1206
    %1208 = vdwg.mxu0
    %v1211 = vrot.slane %v1205, 1
    %v1212 = vrot.slane %v1207, 1
    %v1215 = vadd.f32 %v315, %v1211
    %v1216 = vadd.f32 %v317, %v1212
    %v1217 = vxor.u32 %v1215, 2147483648
    %v1218 = vxor.u32 %v1216, 2147483648
    %v1219 = vmul.f32 %v1217, 1.442695
    %v1220 = vpow.pop %v1219
    %v1221 = vmul.f32 %v1218, 1.442695
    %v1222 = vpow.pop %v1221
    %v1223 = vadd.f32 %v1220, 1.0
    %v1224 = vadd.f32 %v1222, 1.0
    %v1225 = vrcp.pop %v1223
    %v1226 = vmul.f32 1.0, %v1225
    %v1227 = vrcp.pop %v1224
    %v1228 = vmul.f32 1.0, %v1227
    %v1229 = vtanh.pop %v1216
    %v1231 = vrot.slane %v1125, 7
    %v1233 = vmul.f32 %v1226, %v1231
    %1235 = vrot.lane.b32.xlu0 %v1229, 64
    %v1236 = vpop.permute.xlu0 %1235
    %v1238 = vmul.f32 %v1226, %v1236
    %1240 = vrot.lane.b32.xlu0 %v1238, 64
    %v1241 = vpop.permute.xlu0 %1240
    %v1243 = vadd.f32 %v1233, %v1241
    %v1244 = vtanh.pop %v1243
    %1246 = vrot.lane.b32.xlu0 %v1244, 64
    %v1247 = vpop.permute.xlu0 %1246
    %v1249 = vmul.f32 %v1228, %v1247
    %vm1250 = vcmask 523271
    %1251 = vst.msk [vmem:[#allocation2] sm:$0x80] %vm1250, %v1249
    %v1252 = vld [vmem:[#allocation2] sm:$0xff]
    %v1253 = vld [vmem:[#allocation8] sm:$0xff]
    %v1254 = vld [vmem:[#allocation8 + $0x8] sm:$0xff]
    %v1255 = vld [vmem:[#allocation8 + $0x10] sm:$0xff]
    %v1256 = vld [vmem:[#allocation8 + $0x18] sm:$0xff]
    %v1257 = vld [vmem:[#allocation8 + $0x20] sm:$0xff]
    %v1258 = vld [vmem:[#allocation8 + $0x28] sm:$0xff]
    %v1259 = vld [vmem:[#allocation8 + $0x30] sm:$0xff]
    %v1260 = vld [vmem:[#allocation8 + $0x38] sm:$0xff]
    %v1261 = vld [vmem:[#allocation8 + $0x40] sm:$0xff]
    %v1262 = vld [vmem:[#allocation8 + $0x48] sm:$0xff]
    %v1263 = vld [vmem:[#allocation8 + $0x50] sm:$0xff]
    %v1264 = vld [vmem:[#allocation8 + $0x58] sm:$0xff]
    %v1265 = vld [vmem:[#allocation8 + $0x60] sm:$0xff]
    %v1266 = vld [vmem:[#allocation8 + $0x68] sm:$0xff]
    %v1267 = vld [vmem:[#allocation8 + $0x70] sm:$0xff]
    %v1268 = vld [vmem:[#allocation8 + $0x78] sm:$0xff]
    %v1269 = vld [vmem:[#allocation9] sm:$0xff]
    %v1270 = vld [vmem:[#allocation9 + $0x8] sm:$0xff]
    %v1271 = vld [vmem:[#allocation9 + $0x10] sm:$0xff]
    %v1272 = vld [vmem:[#allocation9 + $0x18] sm:$0xff]
    %v1273 = vld [vmem:[#allocation9 + $0x20] sm:$0xff]
    %v1274 = vld [vmem:[#allocation9 + $0x28] sm:$0xff]
    %v1275 = vld [vmem:[#allocation9 + $0x30] sm:$0xff]
    %v1276 = vld [vmem:[#allocation9 + $0x38] sm:$0xff]
    %v1277 = vld [vmem:[#allocation9 + $0x40] sm:$0xff]
    %v1278 = vld [vmem:[#allocation9 + $0x48] sm:$0xff]
    %v1279 = vld [vmem:[#allocation9 + $0x50] sm:$0xff]
    %v1280 = vld [vmem:[#allocation9 + $0x58] sm:$0xff]
    %v1281 = vld [vmem:[#allocation9 + $0x60] sm:$0xff]
    %v1282 = vld [vmem:[#allocation9 + $0x68] sm:$0xff]
    %v1283 = vld [vmem:[#allocation9 + $0x70] sm:$0xff]
    %v1284 = vld [vmem:[#allocation9 + $0x78] sm:$0xff]
    %v1285 = vld [vmem:[#allocation11] sm:$0x3]
    %v1287 = vlaneseq
    %v1288 = vshrl.u32 %v1287, 7
    %v1289 = vsub.s32 0, %v1288
    %v1290 = vrot.slane %v1285, %v1289
    %v1291 = vlaneseq
    %v1292 = vshrl.u32 %v1291, 7
    %v1293 = vsub.s32 1, %v1292
    %v1294 = vrot.slane %v1285, %v1293
    %v1298 = vsel %vm319, %v1252, 0
    %1300 = vmatprep.subr.mxu0 %v1254
    %1301 = vmatpush1.msra.mxu0 %v1253
    %1302 = vmatprep.subr.mxu0 %v1256
    %1303 = vmatpush1.msra.mxu0 %v1255
    %1304 = vmatprep.subr.mxu0 %v1258
    %1305 = vmatpush1.msra.mxu0 %v1257
    %1306 = vmatprep.subr.mxu0 %v1260
    %1307 = vmatpush1.msra.mxu0 %v1259
    %1308 = vmatprep.subr.mxu0 %v1262
    %1309 = vmatpush1.msra.mxu0 %v1261
    %1310 = vmatprep.subr.mxu0 %v1264
    %1311 = vmatpush1.msra.mxu0 %v1263
    %1312 = vmatprep.subr.mxu0 %v1266
    %1313 = vmatpush1.msra.mxu0 %v1265
    %1314 = vmatprep.subr.mxu0 %v1268
    %1315 = vmatpush1.msra.mxu0 %v1267
    %1316 = vmatprep.subr.mxu0 0.0
    %1317 = vmatpush1.msra.mxu0 0.0
    %1318 = vmatprep.subr.mxu0 0.0
    %1319 = vmatpush1.msra.mxu0 0.0
    %1320 = vmatprep.subr.mxu0 0.0
    %1321 = vmatpush1.msra.mxu0 0.0
    %1322 = vmatprep.subr.mxu0 0.0
    %1323 = vmatpush1.msra.mxu0 0.0
    %1324 = vmatprep.subr.mxu0 0.0
    %1325 = vmatpush1.msra.mxu0 0.0
    %1326 = vmatprep.subr.mxu0 0.0
    %1327 = vmatpush1.msra.mxu0 0.0
    %1328 = vmatprep.subr.mxu0 0.0
    %1329 = vmatpush1.msra.mxu0 0.0
    %1330 = vmatprep.subr.mxu0 0.0
    %1331 = vmatpush1.msra.mxu0 0.0
    %1332 = vmatprep.subr.mxu0 0.0
    %1333 = vmatpush1.msra.mxu0 0.0
    %1334 = vmatprep.subr.mxu0 0.0
    %1335 = vmatpush1.msra.mxu0 0.0
    %1336 = vmatprep.subr.mxu0 0.0
    %1337 = vmatpush1.msra.mxu0 0.0
    %1338 = vmatprep.subr.mxu0 0.0
    %1339 = vmatpush1.msra.mxu0 0.0
    %1340 = vmatprep.subr.mxu0 0.0
    %1341 = vmatpush1.msra.mxu0 0.0
    %1342 = vmatprep.subr.mxu0 0.0
    %1343 = vmatpush1.msra.mxu0 0.0
    %1344 = vmatprep.subr.mxu0 0.0
    %1345 = vmatpush1.msra.mxu0 0.0
    %1346 = vmatprep.subr.mxu0 0.0
    %1347 = vmatpush1.msra.mxu0 0.0
    %1348 = vmatprep.subr.mxu0 0.0
    %1349 = vmatpush1.msra.mxu0 0.0
    %1350 = vmatprep.subr.mxu0 0.0
    %1351 = vmatpush1.msra.mxu0 0.0
    %1352 = vmatprep.subr.mxu0 0.0
    %1353 = vmatpush1.msra.mxu0 0.0
    %1354 = vmatprep.subr.mxu0 0.0
    %1355 = vmatpush1.msra.mxu0 0.0
    %1356 = vmatprep.subr.mxu0 0.0
    %1357 = vmatpush1.msra.mxu0 0.0
    %1358 = vmatprep.subr.mxu0 0.0
    %1359 = vmatpush1.msra.mxu0 0.0
    %1360 = vmatprep.subr.mxu0 0.0
    %1361 = vmatpush1.msra.mxu0 0.0
    %1362 = vmatprep.subr.mxu0 0.0
    %1363 = vmatpush1.msra.mxu0 0.0
    %1364 = vmatprep.mubr.f32.mxu0 0.0
    %1365 = vmatmul.mubr.f32.gmra.mrb[0].mxu0 %v1298
    %v1366 = vpop.f32.mrb[0].mxu0
    %v1367 = vadd.f32 %v1290, %v1366
    %v1368 = vpop.f32.mrb[0].mxu0
    %v1369 = vadd.f32 %v1294, %v1368
    %1370 = vdwg.mxu0
    %1371 = vmatprep.subr.mxu0 %v1270
    %1372 = vmatpush1.msra.mxu0 %v1269
    %1373 = vmatprep.subr.mxu0 %v1272
    %1374 = vmatpush1.msra.mxu0 %v1271
    %1375 = vmatprep.subr.mxu0 %v1274
    %1376 = vmatpush1.msra.mxu0 %v1273
    %1377 = vmatprep.subr.mxu0 %v1276
    %1378 = vmatpush1.msra.mxu0 %v1275
    %1379 = vmatprep.subr.mxu0 %v1278
    %1380 = vmatpush1.msra.mxu0 %v1277
    %1381 = vmatprep.subr.mxu0 %v1280
    %1382 = vmatpush1.msra.mxu0 %v1279
    %1383 = vmatprep.subr.mxu0 %v1282
    %1384 = vmatpush1.msra.mxu0 %v1281
    %1385 = vmatprep.subr.mxu0 %v1284
    %1386 = vmatpush1.msra.mxu0 %v1283
    %1387 = vmatprep.subr.mxu0 0.0
    %1388 = vmatpush1.msra.mxu0 0.0
    %1389 = vmatprep.subr.mxu0 0.0
    %1390 = vmatpush1.msra.mxu0 0.0
    %1391 = vmatprep.subr.mxu0 0.0
    %1392 = vmatpush1.msra.mxu0 0.0
    %1393 = vmatprep.subr.mxu0 0.0
    %1394 = vmatpush1.msra.mxu0 0.0
    %1395 = vmatprep.subr.mxu0 0.0
    %1396 = vmatpush1.msra.mxu0 0.0
    %1397 = vmatprep.subr.mxu0 0.0
    %1398 = vmatpush1.msra.mxu0 0.0
    %1399 = vmatprep.subr.mxu0 0.0
    %1400 = vmatpush1.msra.mxu0 0.0
    %1401 = vmatprep.subr.mxu0 0.0
    %1402 = vmatpush1.msra.mxu0 0.0
    %1403 = vmatprep.subr.mxu0 0.0
    %1404 = vmatpush1.msra.mxu0 0.0
    %1405 = vmatprep.subr.mxu0 0.0
    %1406 = vmatpush1.msra.mxu0 0.0
    %1407 = vmatprep.subr.mxu0 0.0
    %1408 = vmatpush1.msra.mxu0 0.0
    %1409 = vmatprep.subr.mxu0 0.0
    %1410 = vmatpush1.msra.mxu0 0.0
    %1411 = vmatprep.subr.mxu0 0.0
    %1412 = vmatpush1.msra.mxu0 0.0
    %1413 = vmatprep.subr.mxu0 0.0
    %1414 = vmatpush1.msra.mxu0 0.0
    %1415 = vmatprep.subr.mxu0 0.0
    %1416 = vmatpush1.msra.mxu0 0.0
    %1417 = vmatprep.subr.mxu0 0.0
    %1418 = vmatpush1.msra.mxu0 0.0
    %1419 = vmatprep.subr.mxu0 0.0
    %1420 = vmatpush1.msra.mxu0 0.0
    %1421 = vmatprep.subr.mxu0 0.0
    %1422 = vmatpush1.msra.mxu0 0.0
    %1423 = vmatprep.subr.mxu0 0.0
    %1424 = vmatpush1.msra.mxu0 0.0
    %1425 = vmatprep.subr.mxu0 0.0
    %1426 = vmatpush1.msra.mxu0 0.0
    %1427 = vmatprep.subr.mxu0 0.0
    %1428 = vmatpush1.msra.mxu0 0.0
    %1429 = vmatprep.subr.mxu0 0.0
    %1430 = vmatpush1.msra.mxu0 0.0
    %1431 = vmatprep.subr.mxu0 0.0
    %1432 = vmatpush1.msra.mxu0 0.0
    %1433 = vmatprep.subr.mxu0 0.0
    %1434 = vmatpush1.msra.mxu0 0.0
    %1435 = vmatprep.mubr.f32.mxu0 0.0
    %1436 = vmatmul.mubr.f32.gmra.mrb[0].mxu0 %v321
    %v1437 = vpop.f32.mrb[0].mxu0
    %v1438 = vadd.f32 0.0, %v1437
    %v1439 = vpop.f32.mrb[0].mxu0
    %v1440 = vadd.f32 0.0, %v1439
    %1441 = vdwg.mxu0
    %v1442 = vadd.f32 %v1367, %v1438
    %v1443 = vadd.f32 %v1369, %v1440
    %v1444 = vxor.u32 %v1442, 2147483648
    %v1445 = vxor.u32 %v1443, 2147483648
    %v1446 = vmul.f32 %v1444, 1.442695
    %v1447 = vpow.pop %v1446
    %v1448 = vmul.f32 %v1445, 1.442695
    %v1449 = vpow.pop %v1448
    %v1450 = vadd.f32 %v1447, 1.0
    %v1451 = vadd.f32 %v1449, 1.0
    %v1452 = vrcp.pop %v1450
    %v1453 = vmul.f32 1.0, %v1452
    %v1454 = vrcp.pop %v1451
    %v1455 = vmul.f32 1.0, %v1454
    %v1456 = vtanh.pop %v1443
    %1458 = vrot.lane.b32.xlu0 %v1456, 64
    %v1459 = vpop.permute.xlu0 %1458
    %v1461 = vmul.f32 %v1453, %v1459
    %1463 = vrot.lane.b32.xlu0 %v1461, 64
    %v1464 = vpop.permute.xlu0 %1463
    %v1466 = vadd.f32 %v1453, %v1464
    %v1467 = vtanh.pop %v1466
    %1469 = vrot.lane.b32.xlu0 %v1467, 64
    %v1470 = vpop.permute.xlu0 %1469
    %v1472 = vmul.f32 %v1455, %v1470
    %1473 = vst.msk [vmem:[#allocation2] sm:$0x1] %vm425, %v1472
    %v1475 = vsel %vm319, %v1472, 0
    %1477 = vmatprep.subr.mxu0 %v1270
    %1478 = vmatpush1.msra.mxu0 %v1269
    %1479 = vmatprep.subr.mxu0 %v1272
    %1480 = vmatpush1.msra.mxu0 %v1271
    %1481 = vmatprep.subr.mxu0 %v1274
    %1482 = vmatpush1.msra.mxu0 %v1273
    %1483 = vmatprep.subr.mxu0 %v1276
    %1484 = vmatpush1.msra.mxu0 %v1275
    %1485 = vmatprep.subr.mxu0 %v1278
    %1486 = vmatpush1.msra.mxu0 %v1277
    %1487 = vmatprep.subr.mxu0 %v1280
    %1488 = vmatpush1.msra.mxu0 %v1279
    %1489 = vmatprep.subr.mxu0 %v1282
    %1490 = vmatpush1.msra.mxu0 %v1281
    %1491 = vmatprep.subr.mxu0 %v1284
    %1492 = vmatpush1.msra.mxu0 %v1283
    %1493 = vmatprep.subr.mxu0 0.0
    %1494 = vmatpush1.msra.mxu0 0.0
    %1495 = vmatprep.subr.mxu0 0.0
    %1496 = vmatpush1.msra.mxu0 0.0
    %1497 = vmatprep.subr.mxu0 0.0
    %1498 = vmatpush1.msra.mxu0 0.0
    %1499 = vmatprep.subr.mxu0 0.0
    %1500 = vmatpush1.msra.mxu0 0.0
    %1501 = vmatprep.subr.mxu0 0.0
    %1502 = vmatpush1.msra.mxu0 0.0
    %1503 = vmatprep.subr.mxu0 0.0
    %1504 = vmatpush1.msra.mxu0 0.0
    %1505 = vmatprep.subr.mxu0 0.0
    %1506 = vmatpush1.msra.mxu0 0.0
    %1507 = vmatprep.subr.mxu0 0.0
    %1508 = vmatpush1.msra.mxu0 0.0
    %1509 = vmatprep.subr.mxu0 0.0
    %1510 = vmatpush1.msra.mxu0 0.0
    %1511 = vmatprep.subr.mxu0 0.0
    %1512 = vmatpush1.msra.mxu0 0.0
    %1513 = vmatprep.subr.mxu0 0.0
    %1514 = vmatpush1.msra.mxu0 0.0
    %1515 = vmatprep.subr.mxu0 0.0
    %1516 = vmatpush1.msra.mxu0 0.0
    %1517 = vmatprep.subr.mxu0 0.0
    %1518 = vmatpush1.msra.mxu0 0.0
    %1519 = vmatprep.subr.mxu0 0.0
    %1520 = vmatpush1.msra.mxu0 0.0
    %1521 = vmatprep.subr.mxu0 0.0
    %1522 = vmatpush1.msra.mxu0 0.0
    %1523 = vmatprep.subr.mxu0 0.0
    %1524 = vmatpush1.msra.mxu0 0.0
    %1525 = vmatprep.subr.mxu0 0.0
    %1526 = vmatpush1.msra.mxu0 0.0
    %1527 = vmatprep.subr.mxu0 0.0
    %1528 = vmatpush1.msra.mxu0 0.0
    %1529 = vmatprep.subr.mxu0 0.0
    %1530 = vmatpush1.msra.mxu0 0.0
    %1531 = vmatprep.subr.mxu0 0.0
    %1532 = vmatpush1.msra.mxu0 0.0
    %1533 = vmatprep.subr.mxu0 0.0
    %1534 = vmatpush1.msra.mxu0 0.0
    %1535 = vmatprep.subr.mxu0 0.0
    %1536 = vmatpush1.msra.mxu0 0.0
    %1537 = vmatprep.subr.mxu0 0.0
    %1538 = vmatpush1.msra.mxu0 0.0
    %1539 = vmatprep.subr.mxu0 0.0
    %1540 = vmatpush1.msra.mxu0 0.0
    %1541 = vmatprep.mubr.f32.mxu0 0.0
    %1542 = vmatmul.mubr.f32.gmra.mrb[0].mxu0 %v1475
    %v1543 = vpop.f32.mrb[0].mxu0
    %v1544 = vadd.f32 0.0, %v1543
    %v1545 = vpop.f32.mrb[0].mxu0
    %v1546 = vadd.f32 0.0, %v1545
    %1547 = vdwg.mxu0
    %v1550 = vrot.slane %v1544, 7
    %v1551 = vrot.slane %v1546, 7
    %v1554 = vadd.f32 %v1367, %v1550
    %v1555 = vadd.f32 %v1369, %v1551
    %v1556 = vxor.u32 %v1554, 2147483648
    %v1557 = vxor.u32 %v1555, 2147483648
    %v1558 = vmul.f32 %v1556, 1.442695
    %v1559 = vpow.pop %v1558
    %v1560 = vmul.f32 %v1557, 1.442695
    %v1561 = vpow.pop %v1560
    %v1562 = vadd.f32 %v1559, 1.0
    %v1563 = vadd.f32 %v1561, 1.0
    %v1564 = vrcp.pop %v1562
    %v1565 = vmul.f32 1.0, %v1564
    %v1566 = vrcp.pop %v1563
    %v1567 = vmul.f32 1.0, %v1566
    %v1568 = vtanh.pop %v1555
    %v1570 = vrot.slane %v1466, 7
    %v1572 = vmul.f32 %v1565, %v1570
    %1574 = vrot.lane.b32.xlu0 %v1568, 64
    %v1575 = vpop.permute.xlu0 %1574
    %v1577 = vmul.f32 %v1565, %v1575
    %1579 = vrot.lane.b32.xlu0 %v1577, 64
    %v1580 = vpop.permute.xlu0 %1579
    %v1582 = vadd.f32 %v1572, %v1580
    %v1583 = vtanh.pop %v1582
    %1585 = vrot.lane.b32.xlu0 %v1583, 64
    %v1586 = vpop.permute.xlu0 %1585
    %v1588 = vmul.f32 %v1567, %v1586
    %1589 = vst.msk [vmem:[#allocation2] sm:$0x2] %vm542, %v1588
    %v1591 = vrot.slane %v1588, 1
    %v1592 = vsel %vm319, %v1591, 0
    %1594 = vmatprep.subr.mxu0 %v1270
    %1595 = vmatpush1.msra.mxu0 %v1269
    %1596 = vmatprep.subr.mxu0 %v1272
    %1597 = vmatpush1.msra.mxu0 %v1271
    %1598 = vmatprep.subr.mxu0 %v1274
    %1599 = vmatpush1.msra.mxu0 %v1273
    %1600 = vmatprep.subr.mxu0 %v1276
    %1601 = vmatpush1.msra.mxu0 %v1275
    %1602 = vmatprep.subr.mxu0 %v1278
    %1603 = vmatpush1.msra.mxu0 %v1277
    %1604 = vmatprep.subr.mxu0 %v1280
    %1605 = vmatpush1.msra.mxu0 %v1279
    %1606 = vmatprep.subr.mxu0 %v1282
    %1607 = vmatpush1.msra.mxu0 %v1281
    %1608 = vmatprep.subr.mxu0 %v1284
    %1609 = vmatpush1.msra.mxu0 %v1283
    %1610 = vmatprep.subr.mxu0 0.0
    %1611 = vmatpush1.msra.mxu0 0.0
    %1612 = vmatprep.subr.mxu0 0.0
    %1613 = vmatpush1.msra.mxu0 0.0
    %1614 = vmatprep.subr.mxu0 0.0
    %1615 = vmatpush1.msra.mxu0 0.0
    %1616 = vmatprep.subr.mxu0 0.0
    %1617 = vmatpush1.msra.mxu0 0.0
    %1618 = vmatprep.subr.mxu0 0.0
    %1619 = vmatpush1.msra.mxu0 0.0
    %1620 = vmatprep.subr.mxu0 0.0
    %1621 = vmatpush1.msra.mxu0 0.0
    %1622 = vmatprep.subr.mxu0 0.0
    %1623 = vmatpush1.msra.mxu0 0.0
    %1624 = vmatprep.subr.mxu0 0.0
    %1625 = vmatpush1.msra.mxu0 0.0
    %1626 = vmatprep.subr.mxu0 0.0
    %1627 = vmatpush1.msra.mxu0 0.0
    %1628 = vmatprep.subr.mxu0 0.0
    %1629 = vmatpush1.msra.mxu0 0.0
    %1630 = vmatprep.subr.mxu0 0.0
    %1631 = vmatpush1.msra.mxu0 0.0
    %1632 = vmatprep.subr.mxu0 0.0
    %1633 = vmatpush1.msra.mxu0 0.0
    %1634 = vmatprep.subr.mxu0 0.0
    %1635 = vmatpush1.msra.mxu0 0.0
    %1636 = vmatprep.subr.mxu0 0.0
    %1637 = vmatpush1.msra.mxu0 0.0
    %1638 = vmatprep.subr.mxu0 0.0
    %1639 = vmatpush1.msra.mxu0 0.0
    %1640 = vmatprep.subr.mxu0 0.0
    %1641 = vmatpush1.msra.mxu0 0.0
    %1642 = vmatprep.subr.mxu0 0.0
    %1643 = vmatpush1.msra.mxu0 0.0
    %1644 = vmatprep.subr.mxu0 0.0
    %1645 = vmatpush1.msra.mxu0 0.0
    %1646 = vmatprep.subr.mxu0 0.0
    %1647 = vmatpush1.msra.mxu0 0.0
    %1648 = vmatprep.subr.mxu0 0.0
    %1649 = vmatpush1.msra.mxu0 0.0
    %1650 = vmatprep.subr.mxu0 0.0
    %1651 = vmatpush1.msra.mxu0 0.0
    %1652 = vmatprep.subr.mxu0 0.0
    %1653 = vmatpush1.msra.mxu0 0.0
    %1654 = vmatprep.subr.mxu0 0.0
    %1655 = vmatpush1.msra.mxu0 0.0
    %1656 = vmatprep.subr.mxu0 0.0
    %1657 = vmatpush1.msra.mxu0 0.0
    %1658 = vmatprep.mubr.f32.mxu0 0.0
    %1659 = vmatmul.mubr.f32.gmra.mrb[0].mxu0 %v1592
    %v1660 = vpop.f32.mrb[0].mxu0
    %v1661 = vadd.f32 0.0, %v1660
    %v1662 = vpop.f32.mrb[0].mxu0
    %v1663 = vadd.f32 0.0, %v1662
    %1664 = vdwg.mxu0
    %v1667 = vrot.slane %v1661, 6
    %v1668 = vrot.slane %v1663, 6
    %v1671 = vadd.f32 %v1367, %v1667
    %v1672 = vadd.f32 %v1369, %v1668
    %v1673 = vxor.u32 %v1671, 2147483648
    %v1674 = vxor.u32 %v1672, 2147483648
    %v1675 = vmul.f32 %v1673, 1.442695
    %v1676 = vpow.pop %v1675
    %v1677 = vmul.f32 %v1674, 1.442695
    %v1678 = vpow.pop %v1677
    %v1679 = vadd.f32 %v1676, 1.0
    %v1680 = vadd.f32 %v1678, 1.0
    %v1681 = vrcp.pop %v1679
    %v1682 = vmul.f32 1.0, %v1681
    %v1683 = vrcp.pop %v1680
    %v1684 = vmul.f32 1.0, %v1683
    %v1685 = vtanh.pop %v1672
    %v1687 = vrot.slane %v1582, 7
    %v1689 = vmul.f32 %v1682, %v1687
    %1691 = vrot.lane.b32.xlu0 %v1685, 64
    %v1692 = vpop.permute.xlu0 %1691
    %v1694 = vmul.f32 %v1682, %v1692
    %1696 = vrot.lane.b32.xlu0 %v1694, 64
    %v1697 = vpop.permute.xlu0 %1696
    %v1699 = vadd.f32 %v1689, %v1697
    %v1700 = vtanh.pop %v1699
    %1702 = vrot.lane.b32.xlu0 %v1700, 64
    %v1703 = vpop.permute.xlu0 %1702
    %v1705 = vmul.f32 %v1684, %v1703
    %1706 = vst.msk [vmem:[#allocation2] sm:$0x4] %vm660, %v1705
    %v1708 = vrot.slane %v1705, 2
    %v1709 = vsel %vm319, %v1708, 0
    %1711 = vmatprep.subr.mxu0 %v1270
    %1712 = vmatpush1.msra.mxu0 %v1269
    %1713 = vmatprep.subr.mxu0 %v1272
    %1714 = vmatpush1.msra.mxu0 %v1271
    %1715 = vmatprep.subr.mxu0 %v1274
    %1716 = vmatpush1.msra.mxu0 %v1273
    %1717 = vmatprep.subr.mxu0 %v1276
    %1718 = vmatpush1.msra.mxu0 %v1275
    %1719 = vmatprep.subr.mxu0 %v1278
    %1720 = vmatpush1.msra.mxu0 %v1277
    %1721 = vmatprep.subr.mxu0 %v1280
    %1722 = vmatpush1.msra.mxu0 %v1279
    %1723 = vmatprep.subr.mxu0 %v1282
    %1724 = vmatpush1.msra.mxu0 %v1281
    %1725 = vmatprep.subr.mxu0 %v1284
    %1726 = vmatpush1.msra.mxu0 %v1283
    %1727 = vmatprep.subr.mxu0 0.0
    %1728 = vmatpush1.msra.mxu0 0.0
    %1729 = vmatprep.subr.mxu0 0.0
    %1730 = vmatpush1.msra.mxu0 0.0
    %1731 = vmatprep.subr.mxu0 0.0
    %1732 = vmatpush1.msra.mxu0 0.0
    %1733 = vmatprep.subr.mxu0 0.0
    %1734 = vmatpush1.msra.mxu0 0.0
    %1735 = vmatprep.subr.mxu0 0.0
    %1736 = vmatpush1.msra.mxu0 0.0
    %1737 = vmatprep.subr.mxu0 0.0
    %1738 = vmatpush1.msra.mxu0 0.0
    %1739 = vmatprep.subr.mxu0 0.0
    %1740 = vmatpush1.msra.mxu0 0.0
    %1741 = vmatprep.subr.mxu0 0.0
    %1742 = vmatpush1.msra.mxu0 0.0
    %1743 = vmatprep.subr.mxu0 0.0
    %1744 = vmatpush1.msra.mxu0 0.0
    %1745 = vmatprep.subr.mxu0 0.0
    %1746 = vmatpush1.msra.mxu0 0.0
    %1747 = vmatprep.subr.mxu0 0.0
    %1748 = vmatpush1.msra.mxu0 0.0
    %1749 = vmatprep.subr.mxu0 0.0
    %1750 = vmatpush1.msra.mxu0 0.0
    %1751 = vmatprep.subr.mxu0 0.0
    %1752 = vmatpush1.msra.mxu0 0.0
    %1753 = vmatprep.subr.mxu0 0.0
    %1754 = vmatpush1.msra.mxu0 0.0
    %1755 = vmatprep.subr.mxu0 0.0
    %1756 = vmatpush1.msra.mxu0 0.0
    %1757 = vmatprep.subr.mxu0 0.0
    %1758 = vmatpush1.msra.mxu0 0.0
    %1759 = vmatprep.subr.mxu0 0.0
    %1760 = vmatpush1.msra.mxu0 0.0
    %1761 = vmatprep.subr.mxu0 0.0
    %1762 = vmatpush1.msra.mxu0 0.0
    %1763 = vmatprep.subr.mxu0 0.0
    %1764 = vmatpush1.msra.mxu0 0.0
    %1765 = vmatprep.subr.mxu0 0.0
    %1766 = vmatpush1.msra.mxu0 0.0
    %1767 = vmatprep.subr.mxu0 0.0
    %1768 = vmatpush1.msra.mxu0 0.0
    %1769 = vmatprep.subr.mxu0 0.0
    %1770 = vmatpush1.msra.mxu0 0.0
    %1771 = vmatprep.subr.mxu0 0.0
    %1772 = vmatpush1.msra.mxu0 0.0
    %1773 = vmatprep.subr.mxu0 0.0
    %1774 = vmatpush1.msra.mxu0 0.0
    %1775 = vmatprep.mubr.f32.mxu0 0.0
    %1776 = vmatmul.mubr.f32.gmra.mrb[0].mxu0 %v1709
    %v1777 = vpop.f32.mrb[0].mxu0
    %v1778 = vadd.f32 0.0, %v1777
    %v1779 = vpop.f32.mrb[0].mxu0
    %v1780 = vadd.f32 0.0, %v1779
    %1781 = vdwg.mxu0
    %v1784 = vrot.slane %v1778, 5
    %v1785 = vrot.slane %v1780, 5
    %v1788 = vadd.f32 %v1367, %v1784
    %v1789 = vadd.f32 %v1369, %v1785
    %v1790 = vxor.u32 %v1788, 2147483648
    %v1791 = vxor.u32 %v1789, 2147483648
    %v1792 = vmul.f32 %v1790, 1.442695
    %v1793 = vpow.pop %v1792
    %v1794 = vmul.f32 %v1791, 1.442695
    %v1795 = vpow.pop %v1794
    %v1796 = vadd.f32 %v1793, 1.0
    %v1797 = vadd.f32 %v1795, 1.0
    %v1798 = vrcp.pop %v1796
    %v1799 = vmul.f32 1.0, %v1798
    %v1800 = vrcp.pop %v1797
    %v1801 = vmul.f32 1.0, %v1800
    %v1802 = vtanh.pop %v1789
    %v1804 = vrot.slane %v1699, 7
    %v1806 = vmul.f32 %v1799, %v1804
    %1808 = vrot.lane.b32.xlu0 %v1802, 64
    %v1809 = vpop.permute.xlu0 %1808
    %v1811 = vmul.f32 %v1799, %v1809
    %1813 = vrot.lane.b32.xlu0 %v1811, 64
    %v1814 = vpop.permute.xlu0 %1813
    %v1816 = vadd.f32 %v1806, %v1814
    %v1817 = vtanh.pop %v1816
    %1819 = vrot.lane.b32.xlu0 %v1817, 64
    %v1820 = vpop.permute.xlu0 %1819
    %v1822 = vmul.f32 %v1801, %v1820
    %1823 = vst.msk [vmem:[#allocation2] sm:$0x8] %vm778, %v1822
    %v1825 = vrot.slane %v1822, 3
    %v1826 = vsel %vm319, %v1825, 0
    %1828 = vmatprep.subr.mxu0 %v1270
    %1829 = vmatpush1.msra.mxu0 %v1269
    %1830 = vmatprep.subr.mxu0 %v1272
    %1831 = vmatpush1.msra.mxu0 %v1271
    %1832 = vmatprep.subr.mxu0 %v1274
    %1833 = vmatpush1.msra.mxu0 %v1273
    %1834 = vmatprep.subr.mxu0 %v1276
    %1835 = vmatpush1.msra.mxu0 %v1275
    %1836 = vmatprep.subr.mxu0 %v1278
    %1837 = vmatpush1.msra.mxu0 %v1277
    %1838 = vmatprep.subr.mxu0 %v1280
    %1839 = vmatpush1.msra.mxu0 %v1279
    %1840 = vmatprep.subr.mxu0 %v1282
    %1841 = vmatpush1.msra.mxu0 %v1281
    %1842 = vmatprep.subr.mxu0 %v1284
    %1843 = vmatpush1.msra.mxu0 %v1283
    %1844 = vmatprep.subr.mxu0 0.0
    %1845 = vmatpush1.msra.mxu0 0.0
    %1846 = vmatprep.subr.mxu0 0.0
    %1847 = vmatpush1.msra.mxu0 0.0
    %1848 = vmatprep.subr.mxu0 0.0
    %1849 = vmatpush1.msra.mxu0 0.0
    %1850 = vmatprep.subr.mxu0 0.0
    %1851 = vmatpush1.msra.mxu0 0.0
    %1852 = vmatprep.subr.mxu0 0.0
    %1853 = vmatpush1.msra.mxu0 0.0
    %1854 = vmatprep.subr.mxu0 0.0
    %1855 = vmatpush1.msra.mxu0 0.0
    %1856 = vmatprep.subr.mxu0 0.0
    %1857 = vmatpush1.msra.mxu0 0.0
    %1858 = vmatprep.subr.mxu0 0.0
    %1859 = vmatpush1.msra.mxu0 0.0
    %1860 = vmatprep.subr.mxu0 0.0
    %1861 = vmatpush1.msra.mxu0 0.0
    %1862 = vmatprep.subr.mxu0 0.0
    %1863 = vmatpush1.msra.mxu0 0.0
    %1864 = vmatprep.subr.mxu0 0.0
    %1865 = vmatpush1.msra.mxu0 0.0
    %1866 = vmatprep.subr.mxu0 0.0
    %1867 = vmatpush1.msra.mxu0 0.0
    %1868 = vmatprep.subr.mxu0 0.0
    %1869 = vmatpush1.msra.mxu0 0.0
    %1870 = vmatprep.subr.mxu0 0.0
    %1871 = vmatpush1.msra.mxu0 0.0
    %1872 = vmatprep.subr.mxu0 0.0
    %1873 = vmatpush1.msra.mxu0 0.0
    %1874 = vmatprep.subr.mxu0 0.0
    %1875 = vmatpush1.msra.mxu0 0.0
    %1876 = vmatprep.subr.mxu0 0.0
    %1877 = vmatpush1.msra.mxu0 0.0
    %1878 = vmatprep.subr.mxu0 0.0
    %1879 = vmatpush1.msra.mxu0 0.0
    %1880 = vmatprep.subr.mxu0 0.0
    %1881 = vmatpush1.msra.mxu0 0.0
    %1882 = vmatprep.subr.mxu0 0.0
    %1883 = vmatpush1.msra.mxu0 0.0
    %1884 = vmatprep.subr.mxu0 0.0
    %1885 = vmatpush1.msra.mxu0 0.0
    %1886 = vmatprep.subr.mxu0 0.0
    %1887 = vmatpush1.msra.mxu0 0.0
    %1888 = vmatprep.subr.mxu0 0.0
    %1889 = vmatpush1.msra.mxu0 0.0
    %1890 = vmatprep.subr.mxu0 0.0
    %1891 = vmatpush1.msra.mxu0 0.0
    %1892 = vmatprep.mubr.f32.mxu0 0.0
    %1893 = vmatmul.mubr.f32.gmra.mrb[0].mxu0 %v1826
    %v1894 = vpop.f32.mrb[0].mxu0
    %v1895 = vadd.f32 0.0, %v1894
    %v1896 = vpop.f32.mrb[0].mxu0
    %v1897 = vadd.f32 0.0, %v1896
    %1898 = vdwg.mxu0
    %v1901 = vrot.slane %v1895, 4
    %v1902 = vrot.slane %v1897, 4
    %v1905 = vadd.f32 %v1367, %v1901
    %v1906 = vadd.f32 %v1369, %v1902
    %v1907 = vxor.u32 %v1905, 2147483648
    %v1908 = vxor.u32 %v1906, 2147483648
    %v1909 = vmul.f32 %v1907, 1.442695
    %v1910 = vpow.pop %v1909
    %v1911 = vmul.f32 %v1908, 1.442695
    %v1912 = vpow.pop %v1911
    %v1913 = vadd.f32 %v1910, 1.0
    %v1914 = vadd.f32 %v1912, 1.0
    %v1915 = vrcp.pop %v1913
    %v1916 = vmul.f32 1.0, %v1915
    %v1917 = vrcp.pop %v1914
    %v1918 = vmul.f32 1.0, %v1917
    %v1919 = vtanh.pop %v1906
    %v1921 = vrot.slane %v1816, 7
    %v1923 = vmul.f32 %v1916, %v1921
    %1925 = vrot.lane.b32.xlu0 %v1919, 64
    %v1926 = vpop.permute.xlu0 %1925
    %v1928 = vmul.f32 %v1916, %v1926
    %1930 = vrot.lane.b32.xlu0 %v1928, 64
    %v1931 = vpop.permute.xlu0 %1930
    %v1933 = vadd.f32 %v1923, %v1931
    %v1934 = vtanh.pop %v1933
    %1936 = vrot.lane.b32.xlu0 %v1934, 64
    %v1937 = vpop.permute.xlu0 %1936
    %v1939 = vmul.f32 %v1918, %v1937
    %1940 = vst.msk [vmem:[#allocation2] sm:$0x10] %vm896, %v1939
    %v1942 = vrot.slane %v1939, 4
    %v1943 = vsel %vm319, %v1942, 0
    %1945 = vmatprep.subr.mxu0 %v1270
    %1946 = vmatpush1.msra.mxu0 %v1269
    %1947 = vmatprep.subr.mxu0 %v1272
    %1948 = vmatpush1.msra.mxu0 %v1271
    %1949 = vmatprep.subr.mxu0 %v1274
    %1950 = vmatpush1.msra.mxu0 %v1273
    %1951 = vmatprep.subr.mxu0 %v1276
    %1952 = vmatpush1.msra.mxu0 %v1275
    %1953 = vmatprep.subr.mxu0 %v1278
    %1954 = vmatpush1.msra.mxu0 %v1277
    %1955 = vmatprep.subr.mxu0 %v1280
    %1956 = vmatpush1.msra.mxu0 %v1279
    %1957 = vmatprep.subr.mxu0 %v1282
    %1958 = vmatpush1.msra.mxu0 %v1281
    %1959 = vmatprep.subr.mxu0 %v1284
    %1960 = vmatpush1.msra.mxu0 %v1283
    %1961 = vmatprep.subr.mxu0 0.0
    %1962 = vmatpush1.msra.mxu0 0.0
    %1963 = vmatprep.subr.mxu0 0.0
    %1964 = vmatpush1.msra.mxu0 0.0
    %1965 = vmatprep.subr.mxu0 0.0
    %1966 = vmatpush1.msra.mxu0 0.0
    %1967 = vmatprep.subr.mxu0 0.0
    %1968 = vmatpush1.msra.mxu0 0.0
    %1969 = vmatprep.subr.mxu0 0.0
    %1970 = vmatpush1.msra.mxu0 0.0
    %1971 = vmatprep.subr.mxu0 0.0
    %1972 = vmatpush1.msra.mxu0 0.0
    %1973 = vmatprep.subr.mxu0 0.0
    %1974 = vmatpush1.msra.mxu0 0.0
    %1975 = vmatprep.subr.mxu0 0.0
    %1976 = vmatpush1.msra.mxu0 0.0
    %1977 = vmatprep.subr.mxu0 0.0
    %1978 = vmatpush1.msra.mxu0 0.0
    %1979 = vmatprep.subr.mxu0 0.0
    %1980 = vmatpush1.msra.mxu0 0.0
    %1981 = vmatprep.subr.mxu0 0.0
    %1982 = vmatpush1.msra.mxu0 0.0
    %1983 = vmatprep.subr.mxu0 0.0
    %1984 = vmatpush1.msra.mxu0 0.0
    %1985 = vmatprep.subr.mxu0 0.0
    %1986 = vmatpush1.msra.mxu0 0.0
    %1987 = vmatprep.subr.mxu0 0.0
    %1988 = vmatpush1.msra.mxu0 0.0
    %1989 = vmatprep.subr.mxu0 0.0
    %1990 = vmatpush1.msra.mxu0 0.0
    %1991 = vmatprep.subr.mxu0 0.0
    %1992 = vmatpush1.msra.mxu0 0.0
    %1993 = vmatprep.subr.mxu0 0.0
    %1994 = vmatpush1.msra.mxu0 0.0
    %1995 = vmatprep.subr.mxu0 0.0
    %1996 = vmatpush1.msra.mxu0 0.0
    %1997 = vmatprep.subr.mxu0 0.0
    %1998 = vmatpush1.msra.mxu0 0.0
    %1999 = vmatprep.subr.mxu0 0.0
    %2000 = vmatpush1.msra.mxu0 0.0
    %2001 = vmatprep.subr.mxu0 0.0
    %2002 = vmatpush1.msra.mxu0 0.0
    %2003 = vmatprep.subr.mxu0 0.0
    %2004 = vmatpush1.msra.mxu0 0.0
    %2005 = vmatprep.subr.mxu0 0.0
    %2006 = vmatpush1.msra.mxu0 0.0
    %2007 = vmatprep.subr.mxu0 0.0
    %2008 = vmatpush1.msra.mxu0 0.0
    %2009 = vmatprep.mubr.f32.mxu0 0.0
    %2010 = vmatmul.mubr.f32.gmra.mrb[0].mxu0 %v1943
    %v2011 = vpop.f32.mrb[0].mxu0
    %v2012 = vadd.f32 0.0, %v2011
    %v2013 = vpop.f32.mrb[0].mxu0
    %v2014 = vadd.f32 0.0, %v2013
    %2015 = vdwg.mxu0
    %v2018 = vrot.slane %v2012, 3
    %v2019 = vrot.slane %v2014, 3
    %v2022 = vadd.f32 %v1367, %v2018
    %v2023 = vadd.f32 %v1369, %v2019
    %v2024 = vxor.u32 %v2022, 2147483648
    %v2025 = vxor.u32 %v2023, 2147483648
    %v2026 = vmul.f32 %v2024, 1.442695
    %v2027 = vpow.pop %v2026
    %v2028 = vmul.f32 %v2025, 1.442695
    %v2029 = vpow.pop %v2028
    %v2030 = vadd.f32 %v2027, 1.0
    %v2031 = vadd.f32 %v2029, 1.0
    %v2032 = vrcp.pop %v2030
    %v2033 = vmul.f32 1.0, %v2032
    %v2034 = vrcp.pop %v2031
    %v2035 = vmul.f32 1.0, %v2034
    %v2036 = vtanh.pop %v2023
    %v2038 = vrot.slane %v1933, 7
    %v2040 = vmul.f32 %v2033, %v2038
    %2042 = vrot.lane.b32.xlu0 %v2036, 64
    %v2043 = vpop.permute.xlu0 %2042
    %v2045 = vmul.f32 %v2033, %v2043
    %2047 = vrot.lane.b32.xlu0 %v2045, 64
    %v2048 = vpop.permute.xlu0 %2047
    %v2050 = vadd.f32 %v2040, %v2048
    %v2051 = vtanh.pop %v2050
    %2053 = vrot.lane.b32.xlu0 %v2051, 64
    %v2054 = vpop.permute.xlu0 %2053
    %v2056 = vmul.f32 %v2035, %v2054
    %2057 = vst.msk [vmem:[#allocation2] sm:$0x20] %vm1014, %v2056
    %v2059 = vrot.slane %v2056, 5
    %v2060 = vsel %vm319, %v2059, 0
    %2062 = vmatprep.subr.mxu0 %v1270
    %2063 = vmatpush1.msra.mxu0 %v1269
    %2064 = vmatprep.subr.mxu0 %v1272
    %2065 = vmatpush1.msra.mxu0 %v1271
    %2066 = vmatprep.subr.mxu0 %v1274
    %2067 = vmatpush1.msra.mxu0 %v1273
    %2068 = vmatprep.subr.mxu0 %v1276
    %2069 = vmatpush1.msra.mxu0 %v1275
    %2070 = vmatprep.subr.mxu0 %v1278
    %2071 = vmatpush1.msra.mxu0 %v1277
    %2072 = vmatprep.subr.mxu0 %v1280
    %2073 = vmatpush1.msra.mxu0 %v1279
    %2074 = vmatprep.subr.mxu0 %v1282
    %2075 = vmatpush1.msra.mxu0 %v1281
    %2076 = vmatprep.subr.mxu0 %v1284
    %2077 = vmatpush1.msra.mxu0 %v1283
    %2078 = vmatprep.subr.mxu0 0.0
    %2079 = vmatpush1.msra.mxu0 0.0
    %2080 = vmatprep.subr.mxu0 0.0
    %2081 = vmatpush1.msra.mxu0 0.0
    %2082 = vmatprep.subr.mxu0 0.0
    %2083 = vmatpush1.msra.mxu0 0.0
    %2084 = vmatprep.subr.mxu0 0.0
    %2085 = vmatpush1.msra.mxu0 0.0
    %2086 = vmatprep.subr.mxu0 0.0
    %2087 = vmatpush1.msra.mxu0 0.0
    %2088 = vmatprep.subr.mxu0 0.0
    %2089 = vmatpush1.msra.mxu0 0.0
    %2090 = vmatprep.subr.mxu0 0.0
    %2091 = vmatpush1.msra.mxu0 0.0
    %2092 = vmatprep.subr.mxu0 0.0
    %2093 = vmatpush1.msra.mxu0 0.0
    %2094 = vmatprep.subr.mxu0 0.0
    %2095 = vmatpush1.msra.mxu0 0.0
    %2096 = vmatprep.subr.mxu0 0.0
    %2097 = vmatpush1.msra.mxu0 0.0
    %2098 = vmatprep.subr.mxu0 0.0
    %2099 = vmatpush1.msra.mxu0 0.0
    %2100 = vmatprep.subr.mxu0 0.0
    %2101 = vmatpush1.msra.mxu0 0.0
    %2102 = vmatprep.subr.mxu0 0.0
    %2103 = vmatpush1.msra.mxu0 0.0
    %2104 = vmatprep.subr.mxu0 0.0
    %2105 = vmatpush1.msra.mxu0 0.0
    %2106 = vmatprep.subr.mxu0 0.0
    %2107 = vmatpush1.msra.mxu0 0.0
    %2108 = vmatprep.subr.mxu0 0.0
    %2109 = vmatpush1.msra.mxu0 0.0
    %2110 = vmatprep.subr.mxu0 0.0
    %2111 = vmatpush1.msra.mxu0 0.0
    %2112 = vmatprep.subr.mxu0 0.0
    %2113 = vmatpush1.msra.mxu0 0.0
    %2114 = vmatprep.subr.mxu0 0.0
    %2115 = vmatpush1.msra.mxu0 0.0
    %2116 = vmatprep.subr.mxu0 0.0
    %2117 = vmatpush1.msra.mxu0 0.0
    %2118 = vmatprep.subr.mxu0 0.0
    %2119 = vmatpush1.msra.mxu0 0.0
    %2120 = vmatprep.subr.mxu0 0.0
    %2121 = vmatpush1.msra.mxu0 0.0
    %2122 = vmatprep.subr.mxu0 0.0
    %2123 = vmatpush1.msra.mxu0 0.0
    %2124 = vmatprep.subr.mxu0 0.0
    %2125 = vmatpush1.msra.mxu0 0.0
    %2126 = vmatprep.mubr.f32.mxu0 0.0
    %2127 = vmatmul.mubr.f32.gmra.mrb[0].mxu0 %v2060
    %v2128 = vpop.f32.mrb[0].mxu0
    %v2129 = vadd.f32 0.0, %v2128
    %v2130 = vpop.f32.mrb[0].mxu0
    %v2131 = vadd.f32 0.0, %v2130
    %2132 = vdwg.mxu0
    %v2135 = vrot.slane %v2129, 2
    %v2136 = vrot.slane %v2131, 2
    %v2139 = vadd.f32 %v1367, %v2135
    %v2140 = vadd.f32 %v1369, %v2136
    %v2141 = vxor.u32 %v2139, 2147483648
    %v2142 = vxor.u32 %v2140, 2147483648
    %v2143 = vmul.f32 %v2141, 1.442695
    %v2144 = vpow.pop %v2143
    %v2145 = vmul.f32 %v2142, 1.442695
    %v2146 = vpow.pop %v2145
    %v2147 = vadd.f32 %v2144, 1.0
    %v2148 = vadd.f32 %v2146, 1.0
    %v2149 = vrcp.pop %v2147
    %v2150 = vmul.f32 1.0, %v2149
    %v2151 = vrcp.pop %v2148
    %v2152 = vmul.f32 1.0, %v2151
    %v2153 = vtanh.pop %v2140
    %v2155 = vrot.slane %v2050, 7
    %v2157 = vmul.f32 %v2150, %v2155
    %2159 = vrot.lane.b32.xlu0 %v2153, 64
    %v2160 = vpop.permute.xlu0 %2159
    %v2162 = vmul.f32 %v2150, %v2160
    %2164 = vrot.lane.b32.xlu0 %v2162, 64
    %v2165 = vpop.permute.xlu0 %2164
    %v2167 = vadd.f32 %v2157, %v2165
    %v2168 = vtanh.pop %v2167
    %2170 = vrot.lane.b32.xlu0 %v2168, 64
    %v2171 = vpop.permute.xlu0 %2170
    %v2173 = vmul.f32 %v2152, %v2171
    %2174 = vst.msk [vmem:[#allocation2] sm:$0x40] %vm1132, %v2173
    %v2176 = vrot.slane %v2173, 6
    %v2177 = vsel %vm319, %v2176, 0
    %2179 = vmatprep.subr.mxu0 %v1270
    %2180 = vmatpush1.msra.mxu0 %v1269
    %2181 = vmatprep.subr.mxu0 %v1272
    %2182 = vmatpush1.msra.mxu0 %v1271
    %2183 = vmatprep.subr.mxu0 %v1274
    %2184 = vmatpush1.msra.mxu0 %v1273
    %2185 = vmatprep.subr.mxu0 %v1276
    %2186 = vmatpush1.msra.mxu0 %v1275
    %2187 = vmatprep.subr.mxu0 %v1278
    %2188 = vmatpush1.msra.mxu0 %v1277
    %2189 = vmatprep.subr.mxu0 %v1280
    %2190 = vmatpush1.msra.mxu0 %v1279
    %2191 = vmatprep.subr.mxu0 %v1282
    %2192 = vmatpush1.msra.mxu0 %v1281
    %2193 = vmatprep.subr.mxu0 %v1284
    %2194 = vmatpush1.msra.mxu0 %v1283
    %2195 = vmatprep.subr.mxu0 0.0
    %2196 = vmatpush1.msra.mxu0 0.0
    %2197 = vmatprep.subr.mxu0 0.0
    %2198 = vmatpush1.msra.mxu0 0.0
    %2199 = vmatprep.subr.mxu0 0.0
    %2200 = vmatpush1.msra.mxu0 0.0
    %2201 = vmatprep.subr.mxu0 0.0
    %2202 = vmatpush1.msra.mxu0 0.0
    %2203 = vmatprep.subr.mxu0 0.0
    %2204 = vmatpush1.msra.mxu0 0.0
    %2205 = vmatprep.subr.mxu0 0.0
    %2206 = vmatpush1.msra.mxu0 0.0
    %2207 = vmatprep.subr.mxu0 0.0
    %2208 = vmatpush1.msra.mxu0 0.0
    %2209 = vmatprep.subr.mxu0 0.0
    %2210 = vmatpush1.msra.mxu0 0.0
    %2211 = vmatprep.subr.mxu0 0.0
    %2212 = vmatpush1.msra.mxu0 0.0
    %2213 = vmatprep.subr.mxu0 0.0
    %2214 = vmatpush1.msra.mxu0 0.0
    %2215 = vmatprep.subr.mxu0 0.0
    %2216 = vmatpush1.msra.mxu0 0.0
    %2217 = vmatprep.subr.mxu0 0.0
    %2218 = vmatpush1.msra.mxu0 0.0
    %2219 = vmatprep.subr.mxu0 0.0
    %2220 = vmatpush1.msra.mxu0 0.0
    %2221 = vmatprep.subr.mxu0 0.0
    %2222 = vmatpush1.msra.mxu0 0.0
    %2223 = vmatprep.subr.mxu0 0.0
    %2224 = vmatpush1.msra.mxu0 0.0
    %2225 = vmatprep.subr.mxu0 0.0
    %2226 = vmatpush1.msra.mxu0 0.0
    %2227 = vmatprep.subr.mxu0 0.0
    %2228 = vmatpush1.msra.mxu0 0.0
    %2229 = vmatprep.subr.mxu0 0.0
    %2230 = vmatpush1.msra.mxu0 0.0
    %2231 = vmatprep.subr.mxu0 0.0
    %2232 = vmatpush1.msra.mxu0 0.0
    %2233 = vmatprep.subr.mxu0 0.0
    %2234 = vmatpush1.msra.mxu0 0.0
    %2235 = vmatprep.subr.mxu0 0.0
    %2236 = vmatpush1.msra.mxu0 0.0
    %2237 = vmatprep.subr.mxu0 0.0
    %2238 = vmatpush1.msra.mxu0 0.0
    %2239 = vmatprep.subr.mxu0 0.0
    %2240 = vmatpush1.msra.mxu0 0.0
    %2241 = vmatprep.subr.mxu0 0.0
    %2242 = vmatpush1.msra.mxu0 0.0
    %2243 = vmatprep.mubr.f32.mxu0 0.0
    %2244 = vmatmul.mubr.f32.gmra.mrb[0].mxu0 %v2177
    %v2245 = vpop.f32.mrb[0].mxu0
    %v2246 = vadd.f32 0.0, %v2245
    %v2247 = vpop.f32.mrb[0].mxu0
    %v2248 = vadd.f32 0.0, %v2247
    %2249 = vdwg.mxu0
    %v2252 = vrot.slane %v2246, 1
    %v2253 = vrot.slane %v2248, 1
    %v2256 = vadd.f32 %v1367, %v2252
    %v2257 = vadd.f32 %v1369, %v2253
    %v2258 = vxor.u32 %v2256, 2147483648
    %v2259 = vxor.u32 %v2257, 2147483648
    %v2260 = vmul.f32 %v2258, 1.442695
    %v2261 = vpow.pop %v2260
    %v2262 = vmul.f32 %v2259, 1.442695
    %v2263 = vpow.pop %v2262
    %v2264 = vadd.f32 %v2261, 1.0
    %v2265 = vadd.f32 %v2263, 1.0
    %v2266 = vrcp.pop %v2264
    %v2267 = vmul.f32 1.0, %v2266
    %v2268 = vrcp.pop %v2265
    %v2269 = vmul.f32 1.0, %v2268
    %v2270 = vtanh.pop %v2257
    %v2272 = vrot.slane %v2167, 7
    %v2274 = vmul.f32 %v2267, %v2272
    %2276 = vrot.lane.b32.xlu0 %v2270, 64
    %v2277 = vpop.permute.xlu0 %2276
    %v2279 = vmul.f32 %v2267, %v2277
    %2281 = vrot.lane.b32.xlu0 %v2279, 64
    %v2282 = vpop.permute.xlu0 %2281
    %v2284 = vadd.f32 %v2274, %v2282
    %v2285 = vtanh.pop %v2284
    %2287 = vrot.lane.b32.xlu0 %v2285, 64
    %v2288 = vpop.permute.xlu0 %2287
    %v2290 = vmul.f32 %v2269, %v2288
    %2291 = vst.msk [vmem:[#allocation2] sm:$0x80] %vm1250, %v2290
    %v2292 = vld [vmem:[#allocation2] sm:$0xff]
    %v2293 = vld [vmem:[%s9] sm:$0xff]
    %v2294 = vld [vmem:[%s9 + $0x8] sm:$0xff]
    %v2295 = vld [vmem:[%s9 + $0x10] sm:$0xff]
    %v2296 = vld [vmem:[%s9 + $0x18] sm:$0xff]
    %v2297 = vld [vmem:[%s9 + $0x20] sm:$0xff]
    %v2298 = vld [vmem:[%s9 + $0x28] sm:$0xff]
    %v2299 = vld [vmem:[%s9 + $0x30] sm:$0xff]
    %v2300 = vld [vmem:[%s9 + $0x38] sm:$0xff]
    %v2301 = vld [vmem:[%s10] sm:$0x1]
    %v2303 = vlaneseq
    %v2304 = vshrl.u32 %v2303, 7
    %v2305 = vsub.s32 0, %v2304
    %v2306 = vrot.slane %v2301, %v2305
    %v2309 = vsel %vm319, %v2292, 0
    %2311 = vmatprep.subr.mxu0 0.0
    %2312 = vmatpush1.msra.mxu0 %v2293
    %2313 = vmatprep.subr.mxu0 0.0
    %2314 = vmatpush1.msra.mxu0 %v2294
    %2315 = vmatprep.subr.mxu0 0.0
    %2316 = vmatpush1.msra.mxu0 %v2295
    %2317 = vmatprep.subr.mxu0 0.0
    %2318 = vmatpush1.msra.mxu0 %v2296
    %2319 = vmatprep.subr.mxu0 0.0
    %2320 = vmatpush1.msra.mxu0 %v2297
    %2321 = vmatprep.subr.mxu0 0.0
    %2322 = vmatpush1.msra.mxu0 %v2298
    %2323 = vmatprep.subr.mxu0 0.0
    %2324 = vmatpush1.msra.mxu0 %v2299
    %2325 = vmatprep.subr.mxu0 0.0
    %2326 = vmatpush1.msra.mxu0 %v2300
    %2327 = vmatprep.subr.mxu0 0.0
    %2328 = vmatpush1.msra.mxu0 0.0
    %2329 = vmatprep.subr.mxu0 0.0
    %2330 = vmatpush1.msra.mxu0 0.0
    %2331 = vmatprep.subr.mxu0 0.0
    %2332 = vmatpush1.msra.mxu0 0.0
    %2333 = vmatprep.subr.mxu0 0.0
    %2334 = vmatpush1.msra.mxu0 0.0
    %2335 = vmatprep.subr.mxu0 0.0
    %2336 = vmatpush1.msra.mxu0 0.0
    %2337 = vmatprep.subr.mxu0 0.0
    %2338 = vmatpush1.msra.mxu0 0.0
    %2339 = vmatprep.subr.mxu0 0.0
    %2340 = vmatpush1.msra.mxu0 0.0
    %2341 = vmatprep.subr.mxu0 0.0
    %2342 = vmatpush1.msra.mxu0 0.0
    %2343 = vmatprep.subr.mxu0 0.0
    %2344 = vmatpush1.msra.mxu0 0.0
    %2345 = vmatprep.subr.mxu0 0.0
    %2346 = vmatpush1.msra.mxu0 0.0
    %2347 = vmatprep.subr.mxu0 0.0
    %2348 = vmatpush1.msra.mxu0 0.0
    %2349 = vmatprep.subr.mxu0 0.0
    %2350 = vmatpush1.msra.mxu0 0.0
    %2351 = vmatprep.subr.mxu0 0.0
    %2352 = vmatpush1.msra.mxu0 0.0
    %2353 = vmatprep.subr.mxu0 0.0
    %2354 = vmatpush1.msra.mxu0 0.0
    %2355 = vmatprep.subr.mxu0 0.0
    %2356 = vmatpush1.msra.mxu0 0.0
    %2357 = vmatprep.subr.mxu0 0.0
    %2358 = vmatpush1.msra.mxu0 0.0
    %2359 = vmatprep.subr.mxu0 0.0
    %2360 = vmatpush1.msra.mxu0 0.0
    %2361 = vmatprep.subr.mxu0 0.0
    %2362 = vmatpush1.msra.mxu0 0.0
    %2363 = vmatprep.subr.mxu0 0.0
    %2364 = vmatpush1.msra.mxu0 0.0
    %2365 = vmatprep.subr.mxu0 0.0
    %2366 = vmatpush1.msra.mxu0 0.0
    %2367 = vmatprep.subr.mxu0 0.0
    %2368 = vmatpush1.msra.mxu0 0.0
    %2369 = vmatprep.subr.mxu0 0.0
    %2370 = vmatpush1.msra.mxu0 0.0
    %2371 = vmatprep.subr.mxu0 0.0
    %2372 = vmatpush1.msra.mxu0 0.0
    %2373 = vmatprep.subr.mxu0 0.0
    %2374 = vmatpush1.msra.mxu0 0.0
    %2375 = vmatprep.mubr.f32.mxu0 0.0
    %2376 = vmatmul.mubr.f32.gmra.mrb[0].mxu0 %v2309
    %v2377 = vpop.f32.mrb[0].mxu0
    %v2378 = vadd.f32 %v2306, %v2377
    %v2379 = vpop.f32.mrb[0].mxu0
    %2380 = vdwg.mxu0
    %vm2381 = vcmp.ge.f32.partialorder %v2378, 0.0
    %v2382 = vmul.f32 %v2378, 0.01
    %v2383 = vsel %vm2381, %v2378, %v2382
    %v2384 = vtanh.pop %v2383
    %v2385 = vlaneseq
    %v2386 = vand.u32 %v2385, 127
    %vm2387 = vcmp.ge.s32.totalorder %v2386, 36
    %v2388 = vsel %vm2387, %v2384, %v2383
    %vm2389 = vcmask 588800
    %2390 = vst.msk [vmem:[#allocation12] sm:$0xff] %vm2389, %v2388
    // Predicated region
    $region66: #{tpu_custom_call.1} parent=1 // pred_check
      _
    $region67: #{tpu_custom_call.1} parent=1 // pred_check_branch
      %2392 = sbr.rel (0) target = $region69
    $region68: #{tpu_custom_call.1} parent=1 // pred_region
      %s2394 = ssub.s32 128, 128
      %2395 = vsyncadd [#allocation5], %s2394
      %s2397 = sshll.u32 [#allocation12], 4
      %s2398 = int_to_ptr.vmem [resolvable:$true] %s2397
      %2400 = dma.vmem_to_hbm [thread:$0]  %s2398, 128, %s11, [#allocation5]
    $region69: #{tpu_custom_call.1} parent=1 // pred_fallthru
      _
    // Predicated region
    $region70: #{tpu_custom_call.1} parent=1 // pred_check
      _
    $region71: #{tpu_custom_call.1} parent=1 // pred_check_branch
      %2402 = sbr.rel (0) target = $region73
    $region72: #{tpu_custom_call.1} parent=1 // pred_region
      %2403 = dma.done [#allocation5], 128
    $region73: #{tpu_custom_call.1} parent=1 // pred_fallthru
      _
    %2404 = vsyncpa [#allocation4], 1
    %2405 = vsyncpa [#allocation7], 1
    %2406 = vsyncpa [#allocation10], 1
    %2407 = vsyncpa [#allocation5], 1

</llo_original>
